<compile_context>
chip_gen: v6e
topology: v6e:2x2x1
jax: 0.10.0
libtpu: 0.0.40
codegen_flags: <defaults>
</compile_context>

<pallas_src>
import math
import functools
import numpy as np
import jax
import jax.numpy as jnp
from jax.experimental import pallas as pl
from jax.experimental.pallas import tpu as pltpu

# ----------------------- small synthetic ViT-MAE config -----------------------
IMG = 16            # image H = W
PATCH = 8           # patch size  -> 2x2 = 4 patches
CHANNELS = 3        # ImageNet normalization implies 3 channels
HIDDEN = 32         # hidden_size
HEADS = 4           # num_attention_heads
LAYERS = 2          # num_hidden_layers
INTERMEDIATE = 64   # intermediate_size
MASK_RATIO = 0.75   # ViT-MAE default mask_ratio
LN_EPS = 1e-12      # ViT-MAE layer_norm_eps
IMAGE_NET_MEAN = np.array([0.485, 0.456, 0.406], np.float32)
IMAGE_NET_STD = np.array([0.229, 0.224, 0.225], np.float32)


# ------------------------------ in-kernel helpers ------------------------------
def _gelu(x):
    # TODO(synk): HF ViT-MAE uses exact erf-GELU; tanh approximation is used here
    # for guaranteed Mosaic lowering (deterministic across backends).
    c = math.sqrt(2.0 / math.pi)
    return 0.5 * x * (1.0 + jnp.tanh(c * (x + 0.044715 * x * x * x)))


def _layernorm(x, g, b):
    # single-pass variance (E[x^2] - mean^2), clamped for safety
    mu = jnp.mean(x, axis=-1, keepdims=True)
    var = jnp.maximum(jnp.mean(x * x, axis=-1, keepdims=True) - mu * mu, 0.0)
    return (x - mu) * jax.lax.rsqrt(var + LN_EPS) * g + b


# ------------------------------- fused Pallas kernel ---------------------------
def _encoder_kernel(x_ref, add_ref, pw_ref,
                    ln1g_ref, ln1b_ref, wqkv_ref, bqkv_ref, wo_ref, bo_ref,
                    ln2g_ref, ln2b_ref, wi_ref, bi_ref, w2_ref, b2_ref,
                    flng_ref, flnb_ref, o_ref, h_ref,
                    *, num_layers, num_heads, seq):
    layer = pl.program_id(1)
    S = seq
    D = h_ref.shape[1]
    dh = D // num_heads
    scale = 1.0 / math.sqrt(dh)

    # ---- first layer step: patch embedding (ImageNet norm folded into pw) ----
    # CLS rows of x are zeros, so they only pick up their additive (cls+pos) term.
    @pl.when(layer == 0)
    def _():
        h_ref[...] = (jnp.dot(x_ref[0].astype(jnp.bfloat16), pw_ref[...],
                              preferred_element_type=jnp.float32) + add_ref[0])

    h = h_ref[...]

    # ---- self-attention block (pre-LayerNorm), fused QKV, head-batched ----
    hn = _layernorm(h, ln1g_ref[0], ln1b_ref[0])
    qkv = (jnp.dot(hn.astype(jnp.bfloat16), wqkv_ref[0],
                   preferred_element_type=jnp.float32) + bqkv_ref[0])        # (S, 3D)
    qh = jnp.swapaxes(qkv[:, 0 * D:1 * D].reshape(S, num_heads, dh), 0, 1)   # (H,S,dh)
    kh = jnp.swapaxes(qkv[:, 1 * D:2 * D].reshape(S, num_heads, dh), 0, 1)
    vh = jnp.swapaxes(qkv[:, 2 * D:3 * D].reshape(S, num_heads, dh), 0, 1)

    s = jnp.einsum("hqd,hkd->hqk",
                   qh.astype(jnp.bfloat16), kh.astype(jnp.bfloat16),
                   preferred_element_type=jnp.float32) * scale               # (H,S,S) f32
    s = s - jnp.max(s, axis=-1, keepdims=True)
    p = jnp.exp(s)
    p = p * pl.reciprocal(jnp.sum(p, axis=-1, keepdims=True), approx=True)
    ctx = jnp.einsum("hqk,hkd->hqd",
                     p.astype(jnp.bfloat16), vh.astype(jnp.bfloat16),
                     preferred_element_type=jnp.float32)                     # (H,S,dh)
    ctx = jnp.swapaxes(ctx, 0, 1).reshape(S, D)
    h = h + (jnp.dot(ctx.astype(jnp.bfloat16), wo_ref[0],
                     preferred_element_type=jnp.float32) + bo_ref[0])

    # ---- MLP block (pre-LayerNorm) ----
    hn2 = _layernorm(h, ln2g_ref[0], ln2b_ref[0])
    m = (jnp.dot(hn2.astype(jnp.bfloat16), wi_ref[0],
                 preferred_element_type=jnp.float32) + bi_ref[0])
    m = _gelu(m)
    h = h + (jnp.dot(m.astype(jnp.bfloat16), w2_ref[0],
                     preferred_element_type=jnp.float32) + b2_ref[0])
    h_ref[...] = h

    # ---- last layer step: final LayerNorm on the CLS row only ----
    @pl.when(layer == num_layers - 1)
    def _():
        o_ref[0] = _layernorm(h[0:1, :], flng_ref[...], flnb_ref[...])


def fused_encoder(x_tok, add_tok, patch_w, stacked, fln_g, fln_b, *, B, S):
    D = patch_w.shape[1]

    def per_batch(a):
        nd = a.ndim
        return pl.BlockSpec((1,) + a.shape[1:], lambda b, l: (b,) + (0,) * (nd - 1))

    def per_layer(a):
        nd = a.ndim
        return pl.BlockSpec((1,) + a.shape[1:], lambda b, l: (l,) + (0,) * (nd - 1))

    def whole(a):
        nd = a.ndim
        return pl.BlockSpec(a.shape, lambda b, l: (0,) * nd)

    args = [x_tok, add_tok, patch_w] + list(stacked) + [fln_g, fln_b]
    in_specs = ([per_batch(x_tok), per_batch(add_tok), whole(patch_w)]
                + [per_layer(w) for w in stacked]
                + [whole(fln_g), whole(fln_b)])

    return pl.pallas_call(
        functools.partial(_encoder_kernel, num_layers=LAYERS,
                          num_heads=HEADS, seq=S),
        grid=(B, LAYERS),
        in_specs=in_specs,
        out_specs=pl.BlockSpec((1, 1, D), lambda b, l: (b, 0, 0)),
        out_shape=jax.ShapeDtypeStruct((B, 1, D), jnp.float32),
        scratch_shapes=[pltpu.VMEM((S, D), jnp.float32)],   # activations carried across layers
        compiler_params=pltpu.CompilerParams(
            dimension_semantics=("parallel", "arbitrary"),
            vmem_limit_bytes=32 * 1024 * 1024),
    )(*args)


# --------------------- ViT-MAE fixed sin-cos position embed -------------------
def _get_1d_sincos(embed_dim, pos):
    omega = np.arange(embed_dim // 2, dtype=np.float64)
    omega /= embed_dim / 2.0
    omega = 1.0 / 10000 ** omega
    out = np.einsum("m,d->md", pos.reshape(-1).astype(np.float64), omega)
    return np.concatenate([np.sin(out), np.cos(out)], axis=1)


def get_2d_sincos_pos_embed(embed_dim, grid_size, add_cls_token=True):
    grid_h = np.arange(grid_size, dtype=np.float32)
    grid_w = np.arange(grid_size, dtype=np.float32)
    grid = np.meshgrid(grid_w, grid_h)                       # w goes first (matches HF)
    grid = np.stack(grid, axis=0).reshape([2, 1, grid_size, grid_size])
    emb_h = _get_1d_sincos(embed_dim // 2, grid[0])
    emb_w = _get_1d_sincos(embed_dim // 2, grid[1])
    pos = np.concatenate([emb_h, emb_w], axis=1)
    if add_cls_token:
        pos = np.concatenate([np.zeros([1, embed_dim]), pos], axis=0)
    return pos.astype(np.float32)


# --------------------------- deterministic parameters -------------------------
def init_params(key):
    D, I, K = HIDDEN, INTERMEDIATE, CHANNELS * PATCH * PATCH
    keys = jax.random.split(key, 3 + LAYERS)

    def dense(k, fan_in, fan_out):
        return 0.02 * jax.random.normal(k, (fan_in, fan_out), jnp.float32)

    params = {
        # conv2d(C, D, kernel=stride=PATCH) flattened to a matmul over (c, ph, pw)
        "patch_w": dense(keys[0], K, D),
        "patch_b": jnp.zeros((1, D), jnp.float32),
        "cls_token": 0.02 * jax.random.normal(keys[1], (1, 1, D), jnp.float32),
        "final_ln_g": jnp.ones((1, D), jnp.float32),
        "final_ln_b": jnp.zeros((1, D), jnp.float32),
        "pos_embed": jnp.asarray(
            get_2d_sincos_pos_embed(D, IMG // PATCH, add_cls_token=True)),  # (1+N, D)
    }
    layers = []
    for li in range(LAYERS):
        lk = jax.random.split(keys[3 + li], 6)
        layers.append(dict(
            ln1_g=jnp.ones((1, D), jnp.float32), ln1_b=jnp.zeros((1, D), jnp.float32),
            wq=dense(lk[0], D, D), bq=jnp.zeros((1, D), jnp.float32),
            wk=dense(lk[1], D, D), bk=jnp.zeros((1, D), jnp.float32),
            wv=dense(lk[2], D, D), bv=jnp.zeros((1, D), jnp.float32),
            wo=dense(lk[3], D, D), bo=jnp.zeros((1, D), jnp.float32),
            ln2_g=jnp.ones((1, D), jnp.float32), ln2_b=jnp.zeros((1, D), jnp.float32),
            wi=dense(lk[4], D, I), bi=jnp.zeros((1, I), jnp.float32),
            w2=dense(lk[5], I, D), b2=jnp.zeros((1, D), jnp.float32),
        ))
    params["layers"] = layers
    return params


def pack_params(params):
    """Fold ImageNet normalization into the patch projection, fuse QKV, stack
    per-layer weights as [LAYERS, ...] arrays, and cast matmul weights to bf16."""
    std_cols = np.repeat(IMAGE_NET_STD, PATCH * PATCH).astype(np.float32)    # (K,)
    mean_cols = np.repeat(IMAGE_NET_MEAN, PATCH * PATCH).astype(np.float32)  # (K,)
    inv_std = jnp.asarray(1.0 / std_cols)[:, None]                           # (K, 1)
    w_folded = (params["patch_w"] * inv_std).astype(jnp.bfloat16)            # (K, D) bf16
    b_folded = (params["patch_b"]
                - jnp.asarray(mean_cols / std_cols)[None, :] @ params["patch_w"])  # (1, D) f32

    def stack(name, dtype=jnp.float32):
        return jnp.stack([lp[name] for lp in params["layers"]], axis=0).astype(dtype)

    wqkv = jnp.stack(
        [jnp.concatenate([lp["wq"], lp["wk"], lp["wv"]], axis=1)
         for lp in params["layers"]], axis=0).astype(jnp.bfloat16)            # (L, D, 3D)
    bqkv = jnp.stack(
        [jnp.concatenate([lp["bq"], lp["bk"], lp["bv"]], axis=1)
         for lp in params["layers"]], axis=0)                                 # (L, 1, 3D)

    stacked = [
        stack("ln1_g"), stack("ln1_b"),
        wqkv, bqkv,
        stack("wo", jnp.bfloat16), stack("bo"),
        stack("ln2_g"), stack("ln2_b"),
        stack("wi", jnp.bfloat16), stack("bi"),
        stack("w2", jnp.bfloat16), stack("b2"),
    ]
    return w_folded, b_folded, stacked


# --------------------------------- forward ------------------------------------
def vitmae_core_forward(x, params, mask_noise):
    """x: [B, C, H, W] float32 in [0, 1]. Returns [B, HIDDEN] (CLS embedding)."""
    B, C, H, W = x.shape
    D = HIDDEN
    gh, gw = H // PATCH, W // PATCH
    N = gh * gw
    K = C * PATCH * PATCH

    patch_w, patch_b, stacked = pack_params(params)

    # patchify (raw pixels; normalization is folded into patch_w / patch_b)
    patches = x.reshape(B, C, gh, PATCH, gw, PATCH)
    patches = patches.transpose(0, 2, 4, 1, 3, 5).reshape(B, N, K)

    # ViT-MAE random masking: keep round(N * (1 - mask_ratio)) patches.
    # Gather commutes with the per-token linear projection, so gather raw
    # patches / pos-embed rows here and do the matmul inside the fused kernel.
    len_keep = int(round(N * (1.0 - MASK_RATIO)))
    ids_shuffle = jnp.argsort(mask_noise, axis=1)
    ids_keep = ids_shuffle[:, :len_keep]
    patches_kept = jnp.take_along_axis(patches, ids_keep[:, :, None], axis=1)  # (B, lk, K)

    pos = params["pos_embed"]                              # (1+N, D), fixed sin-cos
    pos_kept = jnp.take(pos[1:], ids_keep, axis=0)         # (B, lk, D)

    S = 1 + len_keep
    # token rows: raw patch pixels; CLS rows: zeros (only the additive term applies)
    x_tok = jnp.concatenate(
        [jnp.zeros((B, 1, K), jnp.float32), patches_kept], axis=1)           # (B, S, K)
    cls_row = params["cls_token"].reshape(1, D) + pos[:1]                    # (1, D)
    add_tok = jnp.concatenate(
        [jnp.broadcast_to(cls_row[None], (B, 1, D)), pos_kept + patch_b[None]],
        axis=1)                                                              # (B, S, D)

    out = fused_encoder(x_tok, add_tok, patch_w, stacked,
                        params["final_ln_g"], params["final_ln_b"], B=B, S=S)
    return out.reshape(B, D)                               # last_hidden_state[:, 0]


if __name__ == "__main__":
    key = jax.random.PRNGKey(0)
    k_img, k_par, k_noise = jax.random.split(key, 3)

    B = 2
    x = jax.random.uniform(k_img, (B, CHANNELS, IMG, IMG), jnp.float32)
    params = init_params(k_par)
    # stand-in for torch.rand masking noise inside ViTMAE.random_masking
    noise = jax.random.uniform(k_noise, (B, (IMG // PATCH) ** 2), jnp.float32)

    fwd = jax.jit(vitmae_core_forward)
    out = jax.block_until_ready(fwd(x, params, noise))
    assert out.shape == (B, HIDDEN) and out.dtype == jnp.float32
    print("KERNEL_OK")
</pallas_src>

<mosaic_0001>
module attributes {stable_mosaic.version = 11 : i64} {
  func.func @_encoder_kernel(%arg0: i32, %arg1: i32, %arg2: memref<1x2x192xf32, #tpu.memory_space<vmem>>, %arg3: memref<1x2x32xf32, #tpu.memory_space<vmem>>, %arg4: memref<192x32xbf16, #tpu.memory_space<vmem>>, %arg5: memref<1x1x32xf32, #tpu.memory_space<vmem>>, %arg6: memref<1x1x32xf32, #tpu.memory_space<vmem>>, %arg7: memref<1x32x96xbf16, #tpu.memory_space<vmem>>, %arg8: memref<1x1x96xf32, #tpu.memory_space<vmem>>, %arg9: memref<1x32x32xbf16, #tpu.memory_space<vmem>>, %arg10: memref<1x1x32xf32, #tpu.memory_space<vmem>>, %arg11: memref<1x1x32xf32, #tpu.memory_space<vmem>>, %arg12: memref<1x1x32xf32, #tpu.memory_space<vmem>>, %arg13: memref<1x32x64xbf16, #tpu.memory_space<vmem>>, %arg14: memref<1x1x64xf32, #tpu.memory_space<vmem>>, %arg15: memref<1x64x32xbf16, #tpu.memory_space<vmem>>, %arg16: memref<1x1x32xf32, #tpu.memory_space<vmem>>, %arg17: memref<1x32xf32, #tpu.memory_space<vmem>>, %arg18: memref<1x32xf32, #tpu.memory_space<vmem>>, %arg19: memref<1x1x32xf32, #tpu.memory_space<vmem>>, %arg20: memref<2x32xf32, #tpu.memory_space<vmem>>) attributes {dimension_semantics = [#tpu.dimension_semantics<parallel>, #tpu.dimension_semantics<arbitrary>], iteration_bounds = array<i64: 2, 2>, scalar_prefetch = 0 : i64, scratch_operands = 1 : i64, tpu.core_type = #tpu.core_type<tc>, window_params = [{transform_indices = @transform_0, window_bounds = array<i64: 1, 2, 192>}, {transform_indices = @transform_1, window_bounds = array<i64: 1, 2, 32>}, {pipeline_mode = #tpu.pipeline_mode<synchronous>, transform_indices = @transform_2, window_bounds = array<i64: 192, 32>}, {transform_indices = @transform_3, window_bounds = array<i64: 1, 1, 32>}, {transform_indices = @transform_4, window_bounds = array<i64: 1, 1, 32>}, {transform_indices = @transform_5, window_bounds = array<i64: 1, 32, 96>}, {transform_indices = @transform_6, window_bounds = array<i64: 1, 1, 96>}, {transform_indices = @transform_7, window_bounds = array<i64: 1, 32, 32>}, {transform_indices = @transform_8, window_bounds = array<i64: 1, 1, 32>}, {transform_indices = @transform_9, window_bounds = array<i64: 1, 1, 32>}, {transform_indices = @transform_10, window_bounds = array<i64: 1, 1, 32>}, {transform_indices = @transform_11, window_bounds = array<i64: 1, 32, 64>}, {transform_indices = @transform_12, window_bounds = array<i64: 1, 1, 64>}, {transform_indices = @transform_13, window_bounds = array<i64: 1, 64, 32>}, {transform_indices = @transform_14, window_bounds = array<i64: 1, 1, 32>}, {pipeline_mode = #tpu.pipeline_mode<synchronous>, transform_indices = @transform_15, window_bounds = array<i64: 1, 32>}, {pipeline_mode = #tpu.pipeline_mode<synchronous>, transform_indices = @transform_16, window_bounds = array<i64: 1, 32>}, {transform_indices = @transform_17, window_bounds = array<i64: 1, 1, 32>}]} {
    %c0_i32 = arith.constant 0 : i32
    %0 = arith.cmpi eq, %arg1, %c0_i32 : i32
    %1 = arith.extui %0 : i1 to i32
    %c0_i32_0 = arith.constant 0 : i32
    %2 = arith.cmpi ne, %1, %c0_i32_0 : i32
    scf.if %2 {
      %c0_65 = arith.constant 0 : index
      %c0_66 = arith.constant 0 : index
      %c0_67 = arith.constant 0 : index
      %140 = vector.load %arg2[%c0_65, %c0_66, %c0_67] : memref<1x2x192xf32, #tpu.memory_space<vmem>>, vector<1x2x192xf32>
      %141 = vector.shape_cast %140 : vector<1x2x192xf32> to vector<2x192xf32>
      %142 = arith.truncf %141 : vector<2x192xf32> to vector<2x192xbf16>
      %c0_68 = arith.constant 0 : index
      %c0_69 = arith.constant 0 : index
      %143 = vector.load %arg4[%c0_68, %c0_69] : memref<192x32xbf16, #tpu.memory_space<vmem>>, vector<192x32xbf16>
      %cst_70 = arith.constant dense<0.000000e+00> : vector<2x32xf32>
      %144 = tpu.matmul %142, %143, %cst_70 {dimension_numbers = #tpu.dot_dimension_numbers<[1], [0], [0], [1], [0, 0, 1, 1], [], []>} : vector<2x192xbf16>, vector<192x32xbf16>, vector<2x32xf32> -> vector<2x32xf32>
      %c0_71 = arith.constant 0 : index
      %c0_72 = arith.constant 0 : index
      %c0_73 = arith.constant 0 : index
      %145 = vector.load %arg3[%c0_71, %c0_72, %c0_73] : memref<1x2x32xf32, #tpu.memory_space<vmem>>, vector<1x2x32xf32>
      %146 = vector.shape_cast %145 : vector<1x2x32xf32> to vector<2x32xf32>
      %147 = arith.addf %144, %146 : vector<2x32xf32>
      %c0_74 = arith.constant 0 : index
      %c0_75 = arith.constant 0 : index
      %148 = vector.load %arg20[%c0_74, %c0_75] : memref<2x32xf32, #tpu.memory_space<vmem>>, vector<2x32xf32>
      tpu.vector_store %arg20[%c0_74, %c0_75], %147 {strides = array<i32>} : memref<2x32xf32, #tpu.memory_space<vmem>>, vector<2x32xf32>,
    } else {
    }
    %c0 = arith.constant 0 : index
    %c0_1 = arith.constant 0 : index
    %3 = vector.load %arg20[%c0, %c0_1] : memref<2x32xf32, #tpu.memory_space<vmem>>, vector<2x32xf32>
    %c0_2 = arith.constant 0 : index
    %c0_3 = arith.constant 0 : index
    %c0_4 = arith.constant 0 : index
    %4 = vector.load %arg5[%c0_2, %c0_3, %c0_4] : memref<1x1x32xf32, #tpu.memory_space<vmem>>, vector<1x1x32xf32>
    %5 = vector.shape_cast %4 : vector<1x1x32xf32> to vector<1x32xf32>
    %c0_5 = arith.constant 0 : index
    %c0_6 = arith.constant 0 : index
    %c0_7 = arith.constant 0 : index
    %6 = vector.load %arg6[%c0_5, %c0_6, %c0_7] : memref<1x1x32xf32, #tpu.memory_space<vmem>>, vector<1x1x32xf32>
    %7 = vector.shape_cast %6 : vector<1x1x32xf32> to vector<1x32xf32>
    %cst = arith.constant dense<0.000000e+00> : vector<2xf32>
    %8 = vector.multi_reduction <add>, %3, %cst [1] : vector<2x32xf32> to vector<2xf32>
    %9 = vector.shape_cast %8 : vector<2xf32> to vector<2x1xf32>
    %cst_8 = arith.constant 3.200000e+01 : f32
    %10 = vector.broadcast %cst_8 : f32 to vector<2x1xf32>
    %11 = arith.divf %9, %10 : vector<2x1xf32>
    %12 = arith.mulf %3, %3 : vector<2x32xf32>
    %cst_9 = arith.constant dense<0.000000e+00> : vector<2xf32>
    %13 = vector.multi_reduction <add>, %12, %cst_9 [1] : vector<2x32xf32> to vector<2xf32>
    %14 = vector.shape_cast %13 : vector<2xf32> to vector<2x1xf32>
    %cst_10 = arith.constant 3.200000e+01 : f32
    %15 = vector.broadcast %cst_10 : f32 to vector<2x1xf32>
    %16 = arith.divf %14, %15 : vector<2x1xf32>
    %17 = arith.mulf %11, %11 : vector<2x1xf32>
    %18 = arith.subf %16, %17 : vector<2x1xf32>
    %cst_11 = arith.constant 0.000000e+00 : f32
    %19 = vector.broadcast %cst_11 : f32 to vector<2x1xf32>
    %20 = arith.maximumf %18, %19 : vector<2x1xf32>
    %21 = vector.broadcast %11 : vector<2x1xf32> to vector<2x32xf32>
    %22 = arith.subf %3, %21 : vector<2x32xf32>
    %cst_12 = arith.constant 9.99999996E-13 : f32
    %23 = vector.broadcast %cst_12 : f32 to vector<2x1xf32>
    %24 = arith.addf %20, %23 : vector<2x1xf32>
    %25 = math.rsqrt %24 : vector<2x1xf32>
    %26 = vector.broadcast %25 : vector<2x1xf32> to vector<2x32xf32>
    %27 = arith.mulf %22, %26 : vector<2x32xf32>
    %28 = vector.broadcast %5 : vector<1x32xf32> to vector<2x32xf32>
    %29 = arith.mulf %27, %28 : vector<2x32xf32>
    %30 = vector.broadcast %7 : vector<1x32xf32> to vector<2x32xf32>
    %31 = arith.addf %29, %30 : vector<2x32xf32>
    %32 = arith.truncf %31 : vector<2x32xf32> to vector<2x32xbf16>
    %c0_13 = arith.constant 0 : index
    %c0_14 = arith.constant 0 : index
    %c0_15 = arith.constant 0 : index
    %33 = vector.load %arg7[%c0_13, %c0_14, %c0_15] : memref<1x32x96xbf16, #tpu.memory_space<vmem>>, vector<1x32x96xbf16>
    %34 = vector.shape_cast %33 : vector<1x32x96xbf16> to vector<32x96xbf16>
    %cst_16 = arith.constant dense<0.000000e+00> : vector<2x96xf32>
    %35 = tpu.matmul %32, %34, %cst_16 {dimension_numbers = #tpu.dot_dimension_numbers<[1], [0], [0], [1], [0, 0, 1, 1], [], []>} : vector<2x32xbf16>, vector<32x96xbf16>, vector<2x96xf32> -> vector<2x96xf32>
    %c0_17 = arith.constant 0 : index
    %c0_18 = arith.constant 0 : index
    %c0_19 = arith.constant 0 : index
    %36 = vector.load %arg8[%c0_17, %c0_18, %c0_19] : memref<1x1x96xf32, #tpu.memory_space<vmem>>, vector<1x1x96xf32>
    %37 = vector.shape_cast %36 : vector<1x1x96xf32> to vector<1x96xf32>
    %38 = vector.broadcast %37 : vector<1x96xf32> to vector<2x96xf32>
    %39 = arith.addf %35, %38 : vector<2x96xf32>
    %40 = vector.extract_strided_slice %39 {offsets = [0, 0], sizes = [2, 32], strides = [1, 1]} : vector<2x96xf32> to vector<2x32xf32>
    %41 = vector.shape_cast %40 : vector<2x32xf32> to vector<2x4x8xf32>
    %42 = tpu.transpose %41, [1, 0, 2] : vector<2x4x8xf32> -> vector<4x2x8xf32>
    %43 = vector.extract_strided_slice %39 {offsets = [0, 32], sizes = [2, 32], strides = [1, 1]} : vector<2x96xf32> to vector<2x32xf32>
    %44 = vector.shape_cast %43 : vector<2x32xf32> to vector<2x4x8xf32>
    %45 = tpu.transpose %44, [1, 0, 2] : vector<2x4x8xf32> -> vector<4x2x8xf32>
    %46 = vector.extract_strided_slice %39 {offsets = [0, 64], sizes = [2, 32], strides = [1, 1]} : vector<2x96xf32> to vector<2x32xf32>
    %47 = vector.shape_cast %46 : vector<2x32xf32> to vector<2x4x8xf32>
    %48 = tpu.transpose %47, [1, 0, 2] : vector<2x4x8xf32> -> vector<4x2x8xf32>
    %49 = arith.truncf %42 : vector<4x2x8xf32> to vector<4x2x8xbf16>
    %50 = arith.truncf %45 : vector<4x2x8xf32> to vector<4x2x8xbf16>
    "tpu.trace_start"() <{level = 10 : i32, message = "hqd,hkd->hqk"}> : () -> ()
    %cst_20 = arith.constant dense<0.000000e+00> : vector<4x2x2xf32>
    %51 = tpu.matmul %49, %50, %cst_20 {dimension_numbers = #tpu.dot_dimension_numbers<[2], [2], [1], [1], [0, 0, 0, 1, 1, 1], [0], [0]>} : vector<4x2x8xbf16>, vector<4x2x8xbf16>, vector<4x2x2xf32> -> vector<4x2x2xf32>
    "tpu.trace_stop"() : () -> ()
    %cst_21 = arith.constant 0.353553385 : f32
    %52 = vector.broadcast %cst_21 : f32 to vector<4x2x2xf32>
    %53 = arith.mulf %51, %52 : vector<4x2x2xf32>
    %cst_22 = arith.constant dense<0xFF800000> : vector<4x2xf32>
    %54 = vector.multi_reduction <maximumf>, %53, %cst_22 [2] : vector<4x2x2xf32> to vector<4x2xf32>
    %55 = vector.shape_cast %54 : vector<4x2xf32> to vector<4x2x1xf32>
    %56 = vector.broadcast %55 : vector<4x2x1xf32> to vector<4x2x2xf32>
    %57 = arith.subf %53, %56 : vector<4x2x2xf32>
    %58 = math.exp %57 : vector<4x2x2xf32>
    %cst_23 = arith.constant dense<0.000000e+00> : vector<4x2xf32>
    %59 = vector.multi_reduction <add>, %58, %cst_23 [2] : vector<4x2x2xf32> to vector<4x2xf32>
    %60 = vector.shape_cast %59 : vector<4x2xf32> to vector<4x2x1xf32>
    %61 = tpu.reciprocal %60 {approx = true} : vector<4x2x1xf32> -> vector<4x2x1xf32>
    %62 = vector.broadcast %61 : vector<4x2x1xf32> to vector<4x2x2xf32>
    %63 = arith.mulf %58, %62 : vector<4x2x2xf32>
    %64 = arith.truncf %63 : vector<4x2x2xf32> to vector<4x2x2xbf16>
    %65 = arith.truncf %48 : vector<4x2x8xf32> to vector<4x2x8xbf16>
    "tpu.trace_start"() <{level = 10 : i32, message = "hqk,hkd->hqd"}> : () -> ()
    %cst_24 = arith.constant dense<0.000000e+00> : vector<4x2x8xf32>
    %66 = tpu.matmul %64, %65, %cst_24 {dimension_numbers = #tpu.dot_dimension_numbers<[2], [1], [1], [2], [0, 0, 0, 1, 1, 2], [0], [0]>} : vector<4x2x2xbf16>, vector<4x2x8xbf16>, vector<4x2x8xf32> -> vector<4x2x8xf32>
    "tpu.trace_stop"() : () -> ()
    %67 = tpu.transpose %66, [1, 0, 2] : vector<4x2x8xf32> -> vector<2x4x8xf32>
    %68 = vector.shape_cast %67 : vector<2x4x8xf32> to vector<2x32xf32>
    %69 = arith.truncf %68 : vector<2x32xf32> to vector<2x32xbf16>
    %c0_25 = arith.constant 0 : index
    %c0_26 = arith.constant 0 : index
    %c0_27 = arith.constant 0 : index
    %70 = vector.load %arg9[%c0_25, %c0_26, %c0_27] : memref<1x32x32xbf16, #tpu.memory_space<vmem>>, vector<1x32x32xbf16>
    %71 = vector.shape_cast %70 : vector<1x32x32xbf16> to vector<32x32xbf16>
    %cst_28 = arith.constant dense<0.000000e+00> : vector<2x32xf32>
    %72 = tpu.matmul %69, %71, %cst_28 {dimension_numbers = #tpu.dot_dimension_numbers<[1], [0], [0], [1], [0, 0, 1, 1], [], []>} : vector<2x32xbf16>, vector<32x32xbf16>, vector<2x32xf32> -> vector<2x32xf32>
    %c0_29 = arith.constant 0 : index
    %c0_30 = arith.constant 0 : index
    %c0_31 = arith.constant 0 : index
    %73 = vector.load %arg10[%c0_29, %c0_30, %c0_31] : memref<1x1x32xf32, #tpu.memory_space<vmem>>, vector<1x1x32xf32>
    %74 = vector.shape_cast %73 : vector<1x1x32xf32> to vector<1x32xf32>
    %75 = vector.broadcast %74 : vector<1x32xf32> to vector<2x32xf32>
    %76 = arith.addf %72, %75 : vector<2x32xf32>
    %77 = arith.addf %3, %76 : vector<2x32xf32>
    %c0_32 = arith.constant 0 : index
    %c0_33 = arith.constant 0 : index
    %c0_34 = arith.constant 0 : index
    %78 = vector.load %arg11[%c0_32, %c0_33, %c0_34] : memref<1x1x32xf32, #tpu.memory_space<vmem>>, vector<1x1x32xf32>
    %79 = vector.shape_cast %78 : vector<1x1x32xf32> to vector<1x32xf32>
    %c0_35 = arith.constant 0 : index
    %c0_36 = arith.constant 0 : index
    %c0_37 = arith.constant 0 : index
    %80 = vector.load %arg12[%c0_35, %c0_36, %c0_37] : memref<1x1x32xf32, #tpu.memory_space<vmem>>, vector<1x1x32xf32>
    %81 = vector.shape_cast %80 : vector<1x1x32xf32> to vector<1x32xf32>
    %cst_38 = arith.constant dense<0.000000e+00> : vector<2xf32>
    %82 = vector.multi_reduction <add>, %77, %cst_38 [1] : vector<2x32xf32> to vector<2xf32>
    %83 = vector.shape_cast %82 : vector<2xf32> to vector<2x1xf32>
    %cst_39 = arith.constant 3.200000e+01 : f32
    %84 = vector.broadcast %cst_39 : f32 to vector<2x1xf32>
    %85 = arith.divf %83, %84 : vector<2x1xf32>
    %86 = arith.mulf %77, %77 : vector<2x32xf32>
    %cst_40 = arith.constant dense<0.000000e+00> : vector<2xf32>
    %87 = vector.multi_reduction <add>, %86, %cst_40 [1] : vector<2x32xf32> to vector<2xf32>
    %88 = vector.shape_cast %87 : vector<2xf32> to vector<2x1xf32>
    %cst_41 = arith.constant 3.200000e+01 : f32
    %89 = vector.broadcast %cst_41 : f32 to vector<2x1xf32>
    %90 = arith.divf %88, %89 : vector<2x1xf32>
    %91 = arith.mulf %85, %85 : vector<2x1xf32>
    %92 = arith.subf %90, %91 : vector<2x1xf32>
    %cst_42 = arith.constant 0.000000e+00 : f32
    %93 = vector.broadcast %cst_42 : f32 to vector<2x1xf32>
    %94 = arith.maximumf %92, %93 : vector<2x1xf32>
    %95 = vector.broadcast %85 : vector<2x1xf32> to vector<2x32xf32>
    %96 = arith.subf %77, %95 : vector<2x32xf32>
    %cst_43 = arith.constant 9.99999996E-13 : f32
    %97 = vector.broadcast %cst_43 : f32 to vector<2x1xf32>
    %98 = arith.addf %94, %97 : vector<2x1xf32>
    %99 = math.rsqrt %98 : vector<2x1xf32>
    %100 = vector.broadcast %99 : vector<2x1xf32> to vector<2x32xf32>
    %101 = arith.mulf %96, %100 : vector<2x32xf32>
    %102 = vector.broadcast %79 : vector<1x32xf32> to vector<2x32xf32>
    %103 = arith.mulf %101, %102 : vector<2x32xf32>
    %104 = vector.broadcast %81 : vector<1x32xf32> to vector<2x32xf32>
    %105 = arith.addf %103, %104 : vector<2x32xf32>
    %106 = arith.truncf %105 : vector<2x32xf32> to vector<2x32xbf16>
    %c0_44 = arith.constant 0 : index
    %c0_45 = arith.constant 0 : index
    %c0_46 = arith.constant 0 : index
    %107 = vector.load %arg13[%c0_44, %c0_45, %c0_46] : memref<1x32x64xbf16, #tpu.memory_space<vmem>>, vector<1x32x64xbf16>
    %108 = vector.shape_cast %107 : vector<1x32x64xbf16> to vector<32x64xbf16>
    %cst_47 = arith.constant dense<0.000000e+00> : vector<2x64xf32>
    %109 = tpu.matmul %106, %108, %cst_47 {dimension_numbers = #tpu.dot_dimension_numbers<[1], [0], [0], [1], [0, 0, 1, 1], [], []>} : vector<2x32xbf16>, vector<32x64xbf16>, vector<2x64xf32> -> vector<2x64xf32>
    %c0_48 = arith.constant 0 : index
    %c0_49 = arith.constant 0 : index
    %c0_50 = arith.constant 0 : index
    %110 = vector.load %arg14[%c0_48, %c0_49, %c0_50] : memref<1x1x64xf32, #tpu.memory_space<vmem>>, vector<1x1x64xf32>
    %111 = vector.shape_cast %110 : vector<1x1x64xf32> to vector<1x64xf32>
    %112 = vector.broadcast %111 : vector<1x64xf32> to vector<2x64xf32>
    %113 = arith.addf %109, %112 : vector<2x64xf32>
    %cst_51 = arith.constant 5.000000e-01 : f32
    %114 = vector.broadcast %cst_51 : f32 to vector<2x64xf32>
    %115 = arith.mulf %114, %113 : vector<2x64xf32>
    %cst_52 = arith.constant 4.471500e-02 : f32
    %116 = vector.broadcast %cst_52 : f32 to vector<2x64xf32>
    %117 = arith.mulf %116, %113 : vector<2x64xf32>
    %118 = arith.mulf %117, %113 : vector<2x64xf32>
    %119 = arith.mulf %118, %113 : vector<2x64xf32>
    %120 = arith.addf %113, %119 : vector<2x64xf32>
    %cst_53 = arith.constant 0.797884583 : f32
    %121 = vector.broadcast %cst_53 : f32 to vector<2x64xf32>
    %122 = arith.mulf %121, %120 : vector<2x64xf32>
    %123 = math.tanh %122 : vector<2x64xf32>
    %cst_54 = arith.constant 1.000000e+00 : f32
    %124 = vector.broadcast %cst_54 : f32 to vector<2x64xf32>
    %125 = arith.addf %124, %123 : vector<2x64xf32>
    %126 = arith.mulf %115, %125 : vector<2x64xf32>
    %127 = arith.truncf %126 : vector<2x64xf32> to vector<2x64xbf16>
    %c0_55 = arith.constant 0 : index
    %c0_56 = arith.constant 0 : index
    %c0_57 = arith.constant 0 : index
    %128 = vector.load %arg15[%c0_55, %c0_56, %c0_57] : memref<1x64x32xbf16, #tpu.memory_space<vmem>>, vector<1x64x32xbf16>
    %129 = vector.shape_cast %128 : vector<1x64x32xbf16> to vector<64x32xbf16>
    %cst_58 = arith.constant dense<0.000000e+00> : vector<2x32xf32>
    %130 = tpu.matmul %127, %129, %cst_58 {dimension_numbers = #tpu.dot_dimension_numbers<[1], [0], [0], [1], [0, 0, 1, 1], [], []>} : vector<2x64xbf16>, vector<64x32xbf16>, vector<2x32xf32> -> vector<2x32xf32>
    %c0_59 = arith.constant 0 : index
    %c0_60 = arith.constant 0 : index
    %c0_61 = arith.constant 0 : index
    %131 = vector.load %arg16[%c0_59, %c0_60, %c0_61] : memref<1x1x32xf32, #tpu.memory_space<vmem>>, vector<1x1x32xf32>
    %132 = vector.shape_cast %131 : vector<1x1x32xf32> to vector<1x32xf32>
    %133 = vector.broadcast %132 : vector<1x32xf32> to vector<2x32xf32>
    %134 = arith.addf %130, %133 : vector<2x32xf32>
    %135 = arith.addf %77, %134 : vector<2x32xf32>
    %c0_62 = arith.constant 0 : index
    %c0_63 = arith.constant 0 : index
    %136 = vector.load %arg20[%c0_62, %c0_63] : memref<2x32xf32, #tpu.memory_space<vmem>>, vector<2x32xf32>
    tpu.vector_store %arg20[%c0_62, %c0_63], %135 {strides = array<i32>} : memref<2x32xf32, #tpu.memory_space<vmem>>, vector<2x32xf32>,
    %c1_i32 = arith.constant 1 : i32
    %137 = arith.cmpi eq, %arg1, %c1_i32 : i32
    %138 = arith.extui %137 : i1 to i32
    %c0_i32_64 = arith.constant 0 : i32
    %139 = arith.cmpi ne, %138, %c0_i32_64 : i32
    scf.if %139 {
      %140 = vector.extract_strided_slice %135 {offsets = [0, 0], sizes = [1, 32], strides = [1, 1]} : vector<2x32xf32> to vector<1x32xf32>
      %c0_65 = arith.constant 0 : index
      %c0_66 = arith.constant 0 : index
      %141 = vector.load %arg17[%c0_65, %c0_66] : memref<1x32xf32, #tpu.memory_space<vmem>>, vector<1x32xf32>
      %c0_67 = arith.constant 0 : index
      %c0_68 = arith.constant 0 : index
      %142 = vector.load %arg18[%c0_67, %c0_68] : memref<1x32xf32, #tpu.memory_space<vmem>>, vector<1x32xf32>
      %cst_69 = arith.constant dense<0.000000e+00> : vector<1xf32>
      %143 = vector.multi_reduction <add>, %140, %cst_69 [1] : vector<1x32xf32> to vector<1xf32>
      %144 = vector.shape_cast %143 : vector<1xf32> to vector<1x1xf32>
      %cst_70 = arith.constant 3.200000e+01 : f32
      %145 = vector.broadcast %cst_70 : f32 to vector<1x1xf32>
      %146 = arith.divf %144, %145 : vector<1x1xf32>
      %147 = arith.mulf %140, %140 : vector<1x32xf32>
      %cst_71 = arith.constant dense<0.000000e+00> : vector<1xf32>
      %148 = vector.multi_reduction <add>, %147, %cst_71 [1] : vector<1x32xf32> to vector<1xf32>
      %149 = vector.shape_cast %148 : vector<1xf32> to vector<1x1xf32>
      %cst_72 = arith.constant 3.200000e+01 : f32
      %150 = vector.broadcast %cst_72 : f32 to vector<1x1xf32>
      %151 = arith.divf %149, %150 : vector<1x1xf32>
      %152 = arith.mulf %146, %146 : vector<1x1xf32>
      %153 = arith.subf %151, %152 : vector<1x1xf32>
      %cst_73 = arith.constant 0.000000e+00 : f32
      %154 = vector.broadcast %cst_73 : f32 to vector<1x1xf32>
      %155 = arith.maximumf %153, %154 : vector<1x1xf32>
      %156 = vector.broadcast %146 : vector<1x1xf32> to vector<1x32xf32>
      %157 = arith.subf %140, %156 : vector<1x32xf32>
      %cst_74 = arith.constant 9.99999996E-13 : f32
      %158 = vector.broadcast %cst_74 : f32 to vector<1x1xf32>
      %159 = arith.addf %155, %158 : vector<1x1xf32>
      %160 = math.rsqrt %159 : vector<1x1xf32>
      %161 = vector.broadcast %160 : vector<1x1xf32> to vector<1x32xf32>
      %162 = arith.mulf %157, %161 : vector<1x32xf32>
      %163 = arith.mulf %162, %141 : vector<1x32xf32>
      %164 = arith.addf %163, %142 : vector<1x32xf32>
      %c0_75 = arith.constant 0 : index
      %c0_76 = arith.constant 0 : index
      %c0_77 = arith.constant 0 : index
      %165 = vector.load %arg19[%c0_75, %c0_76, %c0_77] : memref<1x1x32xf32, #tpu.memory_space<vmem>>, vector<1x1x32xf32>
      %166 = vector.shape_cast %165 : vector<1x1x32xf32> to vector<1x32xf32>
      %167 = vector.shape_cast %164 : vector<1x32xf32> to vector<1x1x32xf32>
      tpu.vector_store %arg19[%c0_75, %c0_76, %c0_77], %167 {strides = array<i32>} : memref<1x1x32xf32, #tpu.memory_space<vmem>>, vector<1x1x32xf32>,
    } else {
    }
    return
  }
  func.func @transform_0(%arg0: i32, %arg1: i32) -> (i32, i32, i32) {
    %c0_i32 = arith.constant 0 : i32
    %c0_i32_0 = arith.constant 0 : i32
    %c0_i32_1 = arith.constant 0 : i32
    return %arg0, %c0_i32, %c0_i32_0 : i32, i32, i32
  }
  func.func @transform_1(%arg0: i32, %arg1: i32) -> (i32, i32, i32) {
    %c0_i32 = arith.constant 0 : i32
    %c0_i32_0 = arith.constant 0 : i32
    %c0_i32_1 = arith.constant 0 : i32
    return %arg0, %c0_i32, %c0_i32_0 : i32, i32, i32
  }
  func.func @transform_2(%arg0: i32, %arg1: i32) -> (i32, i32) {
    %c0_i32 = arith.constant 0 : i32
    %c0_i32_0 = arith.constant 0 : i32
    %c0_i32_1 = arith.constant 0 : i32
    return %c0_i32, %c0_i32_0 : i32, i32
  }
  func.func @transform_3(%arg0: i32, %arg1: i32) -> (i32, i32, i32) {
    %c0_i32 = arith.constant 0 : i32
    %c0_i32_0 = arith.constant 0 : i32
    %c0_i32_1 = arith.constant 0 : i32
    return %arg1, %c0_i32, %c0_i32_0 : i32, i32, i32
  }
  func.func @transform_4(%arg0: i32, %arg1: i32) -> (i32, i32, i32) {
    %c0_i32 = arith.constant 0 : i32
    %c0_i32_0 = arith.constant 0 : i32
    %c0_i32_1 = arith.constant 0 : i32
    return %arg1, %c0_i32, %c0_i32_0 : i32, i32, i32
  }
  func.func @transform_5(%arg0: i32, %arg1: i32) -> (i32, i32, i32) {
    %c0_i32 = arith.constant 0 : i32
    %c0_i32_0 = arith.constant 0 : i32
    %c0_i32_1 = arith.constant 0 : i32
    return %arg1, %c0_i32, %c0_i32_0 : i32, i32, i32
  }
  func.func @transform_6(%arg0: i32, %arg1: i32) -> (i32, i32, i32) {
    %c0_i32 = arith.constant 0 : i32
    %c0_i32_0 = arith.constant 0 : i32
    %c0_i32_1 = arith.constant 0 : i32
    return %arg1, %c0_i32, %c0_i32_0 : i32, i32, i32
  }
  func.func @transform_7(%arg0: i32, %arg1: i32) -> (i32, i32, i32) {
    %c0_i32 = arith.constant 0 : i32
    %c0_i32_0 = arith.constant 0 : i32
    %c0_i32_1 = arith.constant 0 : i32
    return %arg1, %c0_i32, %c0_i32_0 : i32, i32, i32
  }
  func.func @transform_8(%arg0: i32, %arg1: i32) -> (i32, i32, i32) {
    %c0_i32 = arith.constant 0 : i32
    %c0_i32_0 = arith.constant 0 : i32
    %c0_i32_1 = arith.constant 0 : i32
    return %arg1, %c0_i32, %c0_i32_0 : i32, i32, i32
  }
  func.func @transform_9(%arg0: i32, %arg1: i32) -> (i32, i32, i32) {
    %c0_i32 = arith.constant 0 : i32
    %c0_i32_0 = arith.constant 0 : i32
    %c0_i32_1 = arith.constant 0 : i32
    return %arg1, %c0_i32, %c0_i32_0 : i32, i32, i32
  }
  func.func @transform_10(%arg0: i32, %arg1: i32) -> (i32, i32, i32) {
    %c0_i32 = arith.constant 0 : i32
    %c0_i32_0 = arith.constant 0 : i32
    %c0_i32_1 = arith.constant 0 : i32
    return %arg1, %c0_i32, %c0_i32_0 : i32, i32, i32
  }
  func.func @transform_11(%arg0: i32, %arg1: i32) -> (i32, i32, i32) {
    %c0_i32 = arith.constant 0 : i32
    %c0_i32_0 = arith.constant 0 : i32
    %c0_i32_1 = arith.constant 0 : i32
    return %arg1, %c0_i32, %c0_i32_0 : i32, i32, i32
  }
  func.func @transform_12(%arg0: i32, %arg1: i32) -> (i32, i32, i32) {
    %c0_i32 = arith.constant 0 : i32
    %c0_i32_0 = arith.constant 0 : i32
    %c0_i32_1 = arith.constant 0 : i32
    return %arg1, %c0_i32, %c0_i32_0 : i32, i32, i32
  }
  func.func @transform_13(%arg0: i32, %arg1: i32) -> (i32, i32, i32) {
    %c0_i32 = arith.constant 0 : i32
    %c0_i32_0 = arith.constant 0 : i32
    %c0_i32_1 = arith.constant 0 : i32
    return %arg1, %c0_i32, %c0_i32_0 : i32, i32, i32
  }
  func.func @transform_14(%arg0: i32, %arg1: i32) -> (i32, i32, i32) {
    %c0_i32 = arith.constant 0 : i32
    %c0_i32_0 = arith.constant 0 : i32
    %c0_i32_1 = arith.constant 0 : i32
    return %arg1, %c0_i32, %c0_i32_0 : i32, i32, i32
  }
  func.func @transform_15(%arg0: i32, %arg1: i32) -> (i32, i32) {
    %c0_i32 = arith.constant 0 : i32
    %c0_i32_0 = arith.constant 0 : i32
    %c0_i32_1 = arith.constant 0 : i32
    return %c0_i32, %c0_i32_0 : i32, i32
  }
  func.func @transform_16(%arg0: i32, %arg1: i32) -> (i32, i32) {
    %c0_i32 = arith.constant 0 : i32
    %c0_i32_0 = arith.constant 0 : i32
    %c0_i32_1 = arith.constant 0 : i32
    return %c0_i32, %c0_i32_0 : i32, i32
  }
  func.func @transform_17(%arg0: i32, %arg1: i32) -> (i32, i32, i32) {
    %c0_i32 = arith.constant 0 : i32
    %c0_i32_0 = arith.constant 0 : i32
    %c0_i32_1 = arith.constant 0 : i32
    return %arg0, %c0_i32, %c0_i32_0 : i32, i32, i32
  }
}

</mosaic_0001>

<llo_original>
// kernel: vitmae_core_forward.1
$region0: #{vitmae_core_forward.1}
  #allocation0 [shape = 'u32[]', space=smem, size = 0x4, offset = 0x4, fixed_abs, tag = 'smem constant byte address 0x4 - core index']
  #allocation1 [shape = 'u32[144,128]{1,0:T(1,128)}', space=vmem, size = 0x12000, scoped, tag = 'internal scratch']
  #allocation2 [shape = 'f32[2,32]{1,0:T(2,128)}', space=vmem, size = 0x400, scoped, tag = 'scratch operand']
  %s0 = inlined_call_operand.vmem [shape: f32[2,2,192], index: 0, kind: input, shape index: {}]
  %s1 = inlined_call_operand.vmem [shape: f32[2,2,32], index: 1, kind: input, shape index: {}]
  %s2 = inlined_call_operand.vmem [shape: bf16[192,32], index: 2, kind: input, shape index: {}]
  %s3 = inlined_call_operand.vmem [shape: f32[2,1,32], index: 3, kind: input, shape index: {}]
  %s4 = inlined_call_operand.vmem [shape: f32[2,1,32], index: 4, kind: input, shape index: {}]
  %s5 = inlined_call_operand.vmem [shape: bf16[2,32,96], index: 5, kind: input, shape index: {}]
  %s6 = inlined_call_operand.vmem [shape: f32[2,1,96], index: 6, kind: input, shape index: {}]
  %s7 = inlined_call_operand.vmem [shape: bf16[2,32,32], index: 7, kind: input, shape index: {}]
  %s8 = inlined_call_operand.vmem [shape: f32[2,1,32], index: 8, kind: input, shape index: {}]
  %s9 = inlined_call_operand.vmem [shape: f32[2,1,32], index: 9, kind: input, shape index: {}]
  %s10 = inlined_call_operand.vmem [shape: f32[2,1,32], index: 10, kind: input, shape index: {}]
  %s11 = inlined_call_operand.vmem [shape: bf16[2,32,64], index: 11, kind: input, shape index: {}]
  %s12 = inlined_call_operand.vmem [shape: f32[2,1,64], index: 12, kind: input, shape index: {}]
  %s13 = inlined_call_operand.vmem [shape: bf16[2,64,32], index: 13, kind: input, shape index: {}]
  %s14 = inlined_call_operand.vmem [shape: f32[2,1,32], index: 14, kind: input, shape index: {}]
  %s15 = inlined_call_operand.vmem [shape: f32[1,32], index: 15, kind: input, shape index: {}]
  %s16 = inlined_call_operand.vmem [shape: f32[1,32], index: 16, kind: input, shape index: {}]
  %s17 = inlined_call_operand.hbm [shape: f32[2,1,32], index: 17, kind: output, shape index: {}]
  %s18 = sld [smem:[#allocation0]]
  $region109: #{vitmae_core_forward.1} parent=0
    _
  %s20 = ssub.s32 1, %s18
  %s21 = scalar_select 0, %s20, %s18
  $region1: #{vitmae_core_forward.1} parent=0
    #allocation3 [shape = 'u8[1024]{0}', space=vmem, size = 0x400, scoped, tag = 'output window, operand 0']
    #allocation4 [shape = 's32[2]{0}', space=sflag, size = 0x8, scoped, tag = 'scoped memory for vitmae_core_forward.1']
    %22 = vsyncpa [#allocation4], 0
    %s23 = scalar_lea.sflag [#allocation4], 1
    %24 = vsyncpa %s23, 0
    loop: start=0, step=1, limit=6
    $region2: #{vitmae_core_forward.1} parent=1 // loop_pre_header
      _
    $region3: #{vitmae_core_forward.1} parent=1 // loop_header
      %s26 = sphi 0, %s30
      %p27 = scmp.ge.s32.totalorder %s26, 6
      %s33 = sphi 0, %s45
      %s34 = sphi 0, %s41
      %s35 = sphi 0, %s33
      %s36 = sphi 0, %s34
      %s37 = sphi 0, %s35
      %s38 = sphi 0, %s36
      %s48 = sphi 0, %s50
      %s51 = sphi 0, %s48
      %s52 = sphi 0, %s51
      %s68 = sphi 0, %s52
      %s74 = sphi 0, %s76
      %s77 = sphi 0, %s74
      %s78 = sphi 0, %s77
      %s94 = sphi 0, %s78
      %s98 = sphi 0, %s98
      %s100 = sphi 0, %s98
      %s101 = sphi 0, %s100
      %s115 = sphi 0, %s101
      %s121 = sphi 0, %s123
      %s124 = sphi 0, %s121
      %s125 = sphi 0, %s124
      %s141 = sphi 0, %s125
      %s147 = sphi 0, %s149
      %s150 = sphi 0, %s147
      %s151 = sphi 0, %s150
      %s167 = sphi 0, %s151
      %s173 = sphi 0, %s175
      %s176 = sphi 0, %s173
      %s177 = sphi 0, %s176
      %s193 = sphi 0, %s177
      %s199 = sphi 0, %s201
      %s202 = sphi 0, %s199
      %s203 = sphi 0, %s202
      %s219 = sphi 0, %s203
      %s225 = sphi 0, %s227
      %s228 = sphi 0, %s225
      %s229 = sphi 0, %s228
      %s245 = sphi 0, %s229
      %s251 = sphi 0, %s253
      %s254 = sphi 0, %s251
      %s255 = sphi 0, %s254
      %s271 = sphi 0, %s255
      %s277 = sphi 0, %s279
      %s280 = sphi 0, %s277
      %s281 = sphi 0, %s280
      %s297 = sphi 0, %s281
      %s303 = sphi 0, %s305
      %s306 = sphi 0, %s303
      %s307 = sphi 0, %s306
      %s323 = sphi 0, %s307
      %s329 = sphi 0, %s331
      %s332 = sphi 0, %s329
      %s333 = sphi 0, %s332
      %s349 = sphi 0, %s333
      %s355 = sphi 0, %s357
      %s358 = sphi 0, %s355
      %s359 = sphi 0, %s358
      %s375 = sphi 0, %s359
      %s381 = sphi 0, %s383
      %s384 = sphi 0, %s381
      %s385 = sphi 0, %s384
      %s401 = sphi 0, %s385
      %s407 = sphi 0, %s409
      %s410 = sphi 0, %s407
      %s411 = sphi 0, %s410
      %s427 = sphi 0, %s411
      %s431 = sphi 0, %s431
      %s433 = sphi 0, %s431
      %s434 = sphi 0, %s433
      %s448 = sphi 0, %s434
      %s452 = sphi 0, %s452
      %s454 = sphi 0, %s452
      %s455 = sphi 0, %s454
      %s469 = sphi 0, %s455
      %s475 = sphi 0, %s477
      %s478 = sphi 0, %s475
      %s479 = sphi 0, %s478
      %s495 = sphi 0, %s479
    $region4: #{vitmae_core_forward.1} parent=1 // loop_header_branch
      %29 = sbr.rel (%p27) target = $region8
    $region5: #{vitmae_core_forward.1} parent=1 // loop_body
      %s31 = ssub.s32 %s26, 1
      %s32 = ssub.s32 %s26, 2
      %s39 = sadd.s32 1, %s34
      %p40 = scmp.ge.s32.totalorder %s39, 2
      %s41 = scalar_select %p40, 0, %s39
      %s42 = sadd.s32 1, %s33
      %s43 = scalar_select %p40, %s42, %s33
      %p44 = scmp.ge.s32.totalorder %s43, 2
      %s45 = scalar_select %p44, 0, %s43
      %s46 = ssub.s32 %s33, %s45
      %p47 = scmp.eq.s32.totalorder %s46, 0
      %s49 = sadd.s32 %s48, 1
      %s50 = scalar_select %p47, %s48, %s49
      %p53 = pneg %p47
      %p54 = scmp.eq.s32.totalorder %s26, 3
      %p55 = por %p53, %p54
      %p56 = scmp.ne.s32.totalorder %s48, %s51
      %p57 = scmp.eq.s32.totalorder %s26, 0
      %p58 = por %p56, %p57
      %p59 = scmp.ne.s32.totalorder %s48, %s51
      %p60 = scmp.eq.s32.totalorder %s31, 3
      %p61 = por %p59, %p60
      %p62 = scmp.ne.s32.totalorder %s51, %s52
      %p63 = scmp.eq.s32.totalorder %s31, 0
      %p64 = por %p62, %p63
      %p65 = scmp.ne.s32.totalorder %s51, %s52
      %p66 = scmp.eq.s32.totalorder %s32, 3
      %p67 = por %p65, %p66
      %p69 = scmp.ne.s32.totalorder %s52, %s68
      %p70 = scmp.eq.s32.totalorder %s32, 0
      %p71 = por %p69, %p70
      %s72 = ssub.s32 %s33, %s45
      %p73 = scmp.eq.s32.totalorder %s72, 0
      %s75 = sadd.s32 %s74, 1
      %s76 = scalar_select %p73, %s74, %s75
      %p79 = pneg %p73
      %p80 = scmp.eq.s32.totalorder %s26, 3
      %p81 = por %p79, %p80
      %p82 = scmp.ne.s32.totalorder %s74, %s77
      %p83 = scmp.eq.s32.totalorder %s26, 0
      %p84 = por %p82, %p83
      %p85 = scmp.ne.s32.totalorder %s74, %s77
      %p86 = scmp.eq.s32.totalorder %s31, 3
      %p87 = por %p85, %p86
      %p88 = scmp.ne.s32.totalorder %s77, %s78
      %p89 = scmp.eq.s32.totalorder %s31, 0
      %p90 = por %p88, %p89
      %p91 = scmp.ne.s32.totalorder %s77, %s78
      %p92 = scmp.eq.s32.totalorder %s32, 3
      %p93 = por %p91, %p92
      %p95 = scmp.ne.s32.totalorder %s78, %s94
      %p96 = scmp.eq.s32.totalorder %s32, 0
      %p97 = por %p95, %p96
      %s99 = sadd.s32 %s98, 1
      %p102 = scmp.eq.s32.totalorder %s26, 3
      %p103 = scmp.ne.s32.totalorder %s98, %s100
      %p104 = scmp.eq.s32.totalorder %s26, 0
      %p105 = por %p103, %p104
      %p106 = scmp.ne.s32.totalorder %s98, %s100
      %p107 = scmp.eq.s32.totalorder %s31, 3
      %p108 = por %p106, %p107
      %p109 = scmp.ne.s32.totalorder %s100, %s101
      %p110 = scmp.eq.s32.totalorder %s31, 0
      %p111 = por %p109, %p110
      %p112 = scmp.ne.s32.totalorder %s100, %s101
      %p113 = scmp.eq.s32.totalorder %s32, 3
      %p114 = por %p112, %p113
      %p116 = scmp.ne.s32.totalorder %s101, %s115
      %p117 = scmp.eq.s32.totalorder %s32, 0
      %p118 = por %p116, %p117
      %s119 = ssub.s32 %s34, %s41
      %p120 = scmp.eq.s32.totalorder %s119, 0
      %s122 = sadd.s32 %s121, 1
      %s123 = scalar_select %p120, %s121, %s122
      %p126 = pneg %p120
      %p127 = scmp.eq.s32.totalorder %s26, 3
      %p128 = por %p126, %p127
      %p129 = scmp.ne.s32.totalorder %s121, %s124
      %p130 = scmp.eq.s32.totalorder %s26, 0
      %p131 = por %p129, %p130
      %p132 = scmp.ne.s32.totalorder %s121, %s124
      %p133 = scmp.eq.s32.totalorder %s31, 3
      %p134 = por %p132, %p133
      %p135 = scmp.ne.s32.totalorder %s124, %s125
      %p136 = scmp.eq.s32.totalorder %s31, 0
      %p137 = por %p135, %p136
      %p138 = scmp.ne.s32.totalorder %s124, %s125
      %p139 = scmp.eq.s32.totalorder %s32, 3
      %p140 = por %p138, %p139
      %p142 = scmp.ne.s32.totalorder %s125, %s141
      %p143 = scmp.eq.s32.totalorder %s32, 0
      %p144 = por %p142, %p143
      %s145 = ssub.s32 %s34, %s41
      %p146 = scmp.eq.s32.totalorder %s145, 0
      %s148 = sadd.s32 %s147, 1
      %s149 = scalar_select %p146, %s147, %s148
      %p152 = pneg %p146
      %p153 = scmp.eq.s32.totalorder %s26, 3
      %p154 = por %p152, %p153
      %p155 = scmp.ne.s32.totalorder %s147, %s150
      %p156 = scmp.eq.s32.totalorder %s26, 0
      %p157 = por %p155, %p156
      %p158 = scmp.ne.s32.totalorder %s147, %s150
      %p159 = scmp.eq.s32.totalorder %s31, 3
      %p160 = por %p158, %p159
      %p161 = scmp.ne.s32.totalorder %s150, %s151
      %p162 = scmp.eq.s32.totalorder %s31, 0
      %p163 = por %p161, %p162
      %p164 = scmp.ne.s32.totalorder %s150, %s151
      %p165 = scmp.eq.s32.totalorder %s32, 3
      %p166 = por %p164, %p165
      %p168 = scmp.ne.s32.totalorder %s151, %s167
      %p169 = scmp.eq.s32.totalorder %s32, 0
      %p170 = por %p168, %p169
      %s171 = ssub.s32 %s34, %s41
      %p172 = scmp.eq.s32.totalorder %s171, 0
      %s174 = sadd.s32 %s173, 1
      %s175 = scalar_select %p172, %s173, %s174
      %p178 = pneg %p172
      %p179 = scmp.eq.s32.totalorder %s26, 3
      %p180 = por %p178, %p179
      %p181 = scmp.ne.s32.totalorder %s173, %s176
      %p182 = scmp.eq.s32.totalorder %s26, 0
      %p183 = por %p181, %p182
      %p184 = scmp.ne.s32.totalorder %s173, %s176
      %p185 = scmp.eq.s32.totalorder %s31, 3
      %p186 = por %p184, %p185
      %p187 = scmp.ne.s32.totalorder %s176, %s177
      %p188 = scmp.eq.s32.totalorder %s31, 0
      %p189 = por %p187, %p188
      %p190 = scmp.ne.s32.totalorder %s176, %s177
      %p191 = scmp.eq.s32.totalorder %s32, 3
      %p192 = por %p190, %p191
      %p194 = scmp.ne.s32.totalorder %s177, %s193
      %p195 = scmp.eq.s32.totalorder %s32, 0
      %p196 = por %p194, %p195
      %s197 = ssub.s32 %s34, %s41
      %p198 = scmp.eq.s32.totalorder %s197, 0
      %s200 = sadd.s32 %s199, 1
      %s201 = scalar_select %p198, %s199, %s200
      %p204 = pneg %p198
      %p205 = scmp.eq.s32.totalorder %s26, 3
      %p206 = por %p204, %p205
      %p207 = scmp.ne.s32.totalorder %s199, %s202
      %p208 = scmp.eq.s32.totalorder %s26, 0
      %p209 = por %p207, %p208
      %p210 = scmp.ne.s32.totalorder %s199, %s202
      %p211 = scmp.eq.s32.totalorder %s31, 3
      %p212 = por %p210, %p211
      %p213 = scmp.ne.s32.totalorder %s202, %s203
      %p214 = scmp.eq.s32.totalorder %s31, 0
      %p215 = por %p213, %p214
      %p216 = scmp.ne.s32.totalorder %s202, %s203
      %p217 = scmp.eq.s32.totalorder %s32, 3
      %p218 = por %p216, %p217
      %p220 = scmp.ne.s32.totalorder %s203, %s219
      %p221 = scmp.eq.s32.totalorder %s32, 0
      %p222 = por %p220, %p221
      %s223 = ssub.s32 %s34, %s41
      %p224 = scmp.eq.s32.totalorder %s223, 0
      %s226 = sadd.s32 %s225, 1
      %s227 = scalar_select %p224, %s225, %s226
      %p230 = pneg %p224
      %p231 = scmp.eq.s32.totalorder %s26, 3
      %p232 = por %p230, %p231
      %p233 = scmp.ne.s32.totalorder %s225, %s228
      %p234 = scmp.eq.s32.totalorder %s26, 0
      %p235 = por %p233, %p234
      %p236 = scmp.ne.s32.totalorder %s225, %s228
      %p237 = scmp.eq.s32.totalorder %s31, 3
      %p238 = por %p236, %p237
      %p239 = scmp.ne.s32.totalorder %s228, %s229
      %p240 = scmp.eq.s32.totalorder %s31, 0
      %p241 = por %p239, %p240
      %p242 = scmp.ne.s32.totalorder %s228, %s229
      %p243 = scmp.eq.s32.totalorder %s32, 3
      %p244 = por %p242, %p243
      %p246 = scmp.ne.s32.totalorder %s229, %s245
      %p247 = scmp.eq.s32.totalorder %s32, 0
      %p248 = por %p246, %p247
      %s249 = ssub.s32 %s34, %s41
      %p250 = scmp.eq.s32.totalorder %s249, 0
      %s252 = sadd.s32 %s251, 1
      %s253 = scalar_select %p250, %s251, %s252
      %p256 = pneg %p250
      %p257 = scmp.eq.s32.totalorder %s26, 3
      %p258 = por %p256, %p257
      %p259 = scmp.ne.s32.totalorder %s251, %s254
      %p260 = scmp.eq.s32.totalorder %s26, 0
      %p261 = por %p259, %p260
      %p262 = scmp.ne.s32.totalorder %s251, %s254
      %p263 = scmp.eq.s32.totalorder %s31, 3
      %p264 = por %p262, %p263
      %p265 = scmp.ne.s32.totalorder %s254, %s255
      %p266 = scmp.eq.s32.totalorder %s31, 0
      %p267 = por %p265, %p266
      %p268 = scmp.ne.s32.totalorder %s254, %s255
      %p269 = scmp.eq.s32.totalorder %s32, 3
      %p270 = por %p268, %p269
      %p272 = scmp.ne.s32.totalorder %s255, %s271
      %p273 = scmp.eq.s32.totalorder %s32, 0
      %p274 = por %p272, %p273
      %s275 = ssub.s32 %s34, %s41
      %p276 = scmp.eq.s32.totalorder %s275, 0
      %s278 = sadd.s32 %s277, 1
      %s279 = scalar_select %p276, %s277, %s278
      %p282 = pneg %p276
      %p283 = scmp.eq.s32.totalorder %s26, 3
      %p284 = por %p282, %p283
      %p285 = scmp.ne.s32.totalorder %s277, %s280
      %p286 = scmp.eq.s32.totalorder %s26, 0
      %p287 = por %p285, %p286
      %p288 = scmp.ne.s32.totalorder %s277, %s280
      %p289 = scmp.eq.s32.totalorder %s31, 3
      %p290 = por %p288, %p289
      %p291 = scmp.ne.s32.totalorder %s280, %s281
      %p292 = scmp.eq.s32.totalorder %s31, 0
      %p293 = por %p291, %p292
      %p294 = scmp.ne.s32.totalorder %s280, %s281
      %p295 = scmp.eq.s32.totalorder %s32, 3
      %p296 = por %p294, %p295
      %p298 = scmp.ne.s32.totalorder %s281, %s297
      %p299 = scmp.eq.s32.totalorder %s32, 0
      %p300 = por %p298, %p299
      %s301 = ssub.s32 %s34, %s41
      %p302 = scmp.eq.s32.totalorder %s301, 0
      %s304 = sadd.s32 %s303, 1
      %s305 = scalar_select %p302, %s303, %s304
      %p308 = pneg %p302
      %p309 = scmp.eq.s32.totalorder %s26, 3
      %p310 = por %p308, %p309
      %p311 = scmp.ne.s32.totalorder %s303, %s306
      %p312 = scmp.eq.s32.totalorder %s26, 0
      %p313 = por %p311, %p312
      %p314 = scmp.ne.s32.totalorder %s303, %s306
      %p315 = scmp.eq.s32.totalorder %s31, 3
      %p316 = por %p314, %p315
      %p317 = scmp.ne.s32.totalorder %s306, %s307
      %p318 = scmp.eq.s32.totalorder %s31, 0
      %p319 = por %p317, %p318
      %p320 = scmp.ne.s32.totalorder %s306, %s307
      %p321 = scmp.eq.s32.totalorder %s32, 3
      %p322 = por %p320, %p321
      %p324 = scmp.ne.s32.totalorder %s307, %s323
      %p325 = scmp.eq.s32.totalorder %s32, 0
      %p326 = por %p324, %p325
      %s327 = ssub.s32 %s34, %s41
      %p328 = scmp.eq.s32.totalorder %s327, 0
      %s330 = sadd.s32 %s329, 1
      %s331 = scalar_select %p328, %s329, %s330
      %p334 = pneg %p328
      %p335 = scmp.eq.s32.totalorder %s26, 3
      %p336 = por %p334, %p335
      %p337 = scmp.ne.s32.totalorder %s329, %s332
      %p338 = scmp.eq.s32.totalorder %s26, 0
      %p339 = por %p337, %p338
      %p340 = scmp.ne.s32.totalorder %s329, %s332
      %p341 = scmp.eq.s32.totalorder %s31, 3
      %p342 = por %p340, %p341
      %p343 = scmp.ne.s32.totalorder %s332, %s333
      %p344 = scmp.eq.s32.totalorder %s31, 0
      %p345 = por %p343, %p344
      %p346 = scmp.ne.s32.totalorder %s332, %s333
      %p347 = scmp.eq.s32.totalorder %s32, 3
      %p348 = por %p346, %p347
      %p350 = scmp.ne.s32.totalorder %s333, %s349
      %p351 = scmp.eq.s32.totalorder %s32, 0
      %p352 = por %p350, %p351
      %s353 = ssub.s32 %s34, %s41
      %p354 = scmp.eq.s32.totalorder %s353, 0
      %s356 = sadd.s32 %s355, 1
      %s357 = scalar_select %p354, %s355, %s356
      %p360 = pneg %p354
      %p361 = scmp.eq.s32.totalorder %s26, 3
      %p362 = por %p360, %p361
      %p363 = scmp.ne.s32.totalorder %s355, %s358
      %p364 = scmp.eq.s32.totalorder %s26, 0
      %p365 = por %p363, %p364
      %p366 = scmp.ne.s32.totalorder %s355, %s358
      %p367 = scmp.eq.s32.totalorder %s31, 3
      %p368 = por %p366, %p367
      %p369 = scmp.ne.s32.totalorder %s358, %s359
      %p370 = scmp.eq.s32.totalorder %s31, 0
      %p371 = por %p369, %p370
      %p372 = scmp.ne.s32.totalorder %s358, %s359
      %p373 = scmp.eq.s32.totalorder %s32, 3
      %p374 = por %p372, %p373
      %p376 = scmp.ne.s32.totalorder %s359, %s375
      %p377 = scmp.eq.s32.totalorder %s32, 0
      %p378 = por %p376, %p377
      %s379 = ssub.s32 %s34, %s41
      %p380 = scmp.eq.s32.totalorder %s379, 0
      %s382 = sadd.s32 %s381, 1
      %s383 = scalar_select %p380, %s381, %s382
      %p386 = pneg %p380
      %p387 = scmp.eq.s32.totalorder %s26, 3
      %p388 = por %p386, %p387
      %p389 = scmp.ne.s32.totalorder %s381, %s384
      %p390 = scmp.eq.s32.totalorder %s26, 0
      %p391 = por %p389, %p390
      %p392 = scmp.ne.s32.totalorder %s381, %s384
      %p393 = scmp.eq.s32.totalorder %s31, 3
      %p394 = por %p392, %p393
      %p395 = scmp.ne.s32.totalorder %s384, %s385
      %p396 = scmp.eq.s32.totalorder %s31, 0
      %p397 = por %p395, %p396
      %p398 = scmp.ne.s32.totalorder %s384, %s385
      %p399 = scmp.eq.s32.totalorder %s32, 3
      %p400 = por %p398, %p399
      %p402 = scmp.ne.s32.totalorder %s385, %s401
      %p403 = scmp.eq.s32.totalorder %s32, 0
      %p404 = por %p402, %p403
      %s405 = ssub.s32 %s34, %s41
      %p406 = scmp.eq.s32.totalorder %s405, 0
      %s408 = sadd.s32 %s407, 1
      %s409 = scalar_select %p406, %s407, %s408
      %p412 = pneg %p406
      %p413 = scmp.eq.s32.totalorder %s26, 3
      %p414 = por %p412, %p413
      %p415 = scmp.ne.s32.totalorder %s407, %s410
      %p416 = scmp.eq.s32.totalorder %s26, 0
      %p417 = por %p415, %p416
      %p418 = scmp.ne.s32.totalorder %s407, %s410
      %p419 = scmp.eq.s32.totalorder %s31, 3
      %p420 = por %p418, %p419
      %p421 = scmp.ne.s32.totalorder %s410, %s411
      %p422 = scmp.eq.s32.totalorder %s31, 0
      %p423 = por %p421, %p422
      %p424 = scmp.ne.s32.totalorder %s410, %s411
      %p425 = scmp.eq.s32.totalorder %s32, 3
      %p426 = por %p424, %p425
      %p428 = scmp.ne.s32.totalorder %s411, %s427
      %p429 = scmp.eq.s32.totalorder %s32, 0
      %p430 = por %p428, %p429
      %s432 = sadd.s32 %s431, 1
      %p435 = scmp.eq.s32.totalorder %s26, 3
      %p436 = scmp.ne.s32.totalorder %s431, %s433
      %p437 = scmp.eq.s32.totalorder %s26, 0
      %p438 = por %p436, %p437
      %p439 = scmp.ne.s32.totalorder %s431, %s433
      %p440 = scmp.eq.s32.totalorder %s31, 3
      %p441 = por %p439, %p440
      %p442 = scmp.ne.s32.totalorder %s433, %s434
      %p443 = scmp.eq.s32.totalorder %s31, 0
      %p444 = por %p442, %p443
      %p445 = scmp.ne.s32.totalorder %s433, %s434
      %p446 = scmp.eq.s32.totalorder %s32, 3
      %p447 = por %p445, %p446
      %p449 = scmp.ne.s32.totalorder %s434, %s448
      %p450 = scmp.eq.s32.totalorder %s32, 0
      %p451 = por %p449, %p450
      %s453 = sadd.s32 %s452, 1
      %p456 = scmp.eq.s32.totalorder %s26, 3
      %p457 = scmp.ne.s32.totalorder %s452, %s454
      %p458 = scmp.eq.s32.totalorder %s26, 0
      %p459 = por %p457, %p458
      %p460 = scmp.ne.s32.totalorder %s452, %s454
      %p461 = scmp.eq.s32.totalorder %s31, 3
      %p462 = por %p460, %p461
      %p463 = scmp.ne.s32.totalorder %s454, %s455
      %p464 = scmp.eq.s32.totalorder %s31, 0
      %p465 = por %p463, %p464
      %p466 = scmp.ne.s32.totalorder %s454, %s455
      %p467 = scmp.eq.s32.totalorder %s32, 3
      %p468 = por %p466, %p467
      %p470 = scmp.ne.s32.totalorder %s455, %s469
      %p471 = scmp.eq.s32.totalorder %s32, 0
      %p472 = por %p470, %p471
      %s473 = ssub.s32 %s33, %s45
      %p474 = scmp.eq.s32.totalorder %s473, 0
      %s476 = sadd.s32 %s475, 1
      %s477 = scalar_select %p474, %s475, %s476
      %p480 = pneg %p474
      %p481 = scmp.eq.s32.totalorder %s26, 3
      %p482 = por %p480, %p481
      %p483 = scmp.ne.s32.totalorder %s475, %s478
      %p484 = scmp.eq.s32.totalorder %s26, 0
      %p485 = por %p483, %p484
      %p486 = scmp.ne.s32.totalorder %s475, %s478
      %p487 = scmp.eq.s32.totalorder %s31, 3
      %p488 = por %p486, %p487
      %p489 = scmp.ne.s32.totalorder %s478, %s479
      %p490 = scmp.eq.s32.totalorder %s31, 0
      %p491 = por %p489, %p490
      %p492 = scmp.ne.s32.totalorder %s478, %s479
      %p493 = scmp.eq.s32.totalorder %s32, 3
      %p494 = por %p492, %p493
      %p496 = scmp.ne.s32.totalorder %s479, %s495
      %p497 = scmp.eq.s32.totalorder %s32, 0
      %p498 = por %p496, %p497
      %p499 = scmp.le.s32.totalorder 1, %s26
      %p500 = scmp.lt.s32.totalorder %s26, 5
      %p501 = pnand %p499, %p500
      %p502 = pneg %p501
      // Predicated region
      $region9: #{vitmae_core_forward.1} parent=5 // pred_check
        _
      $region10: #{vitmae_core_forward.1} parent=5 // pred_check_branch
        %504 = sbr.rel (%p501) target = $region12
      $region11: #{vitmae_core_forward.1} parent=5 // pred_region
        %s505 = ssub.s32 %s26, 1
        // Predicated region
        $region13: #{vitmae_core_forward.1} parent=11 // pred_check
          %p506 = pneg %p111
        $region14: #{vitmae_core_forward.1} parent=11 // pred_check_branch
          %508 = sbr.rel (%p506) target = $region16
        $region15: #{vitmae_core_forward.1} parent=11 // pred_region
          _
        $region16: #{vitmae_core_forward.1} parent=11 // pred_fallthru
          _
        // Predicated region
        $region17: #{vitmae_core_forward.1} parent=11 // pred_check
          %p509 = pneg %p444
        $region18: #{vitmae_core_forward.1} parent=11 // pred_check_branch
          %511 = sbr.rel (%p509) target = $region20
        $region19: #{vitmae_core_forward.1} parent=11 // pred_region
          _
        $region20: #{vitmae_core_forward.1} parent=11 // pred_fallthru
          _
        // Predicated region
        $region21: #{vitmae_core_forward.1} parent=11 // pred_check
          %p512 = pneg %p465
        $region22: #{vitmae_core_forward.1} parent=11 // pred_check_branch
          %514 = sbr.rel (%p512) target = $region24
        $region23: #{vitmae_core_forward.1} parent=11 // pred_region
          _
        $region24: #{vitmae_core_forward.1} parent=11 // pred_fallthru
          _
      $region12: #{vitmae_core_forward.1} parent=5 // pred_fallthru
        _
      %p515 = scmp.lt.s32.totalorder %s26, 4
      // Predicated region
      $region25: #{vitmae_core_forward.1} parent=5 // pred_check
        %p516 = pneg %p515
      $region26: #{vitmae_core_forward.1} parent=5 // pred_check_branch
        %518 = sbr.rel (%p516) target = $region28
      $region27: #{vitmae_core_forward.1} parent=5 // pred_region
        // Predicated region
        $region29: #{vitmae_core_forward.1} parent=27 // pred_check
          %p519 = pneg %p58
        $region30: #{vitmae_core_forward.1} parent=27 // pred_check_branch
          %521 = sbr.rel (%p519) target = $region32
        $region31: #{vitmae_core_forward.1} parent=27 // pred_region
          %p522 = scmp.lt.s32.totalorder %s33, 1
          %s523 = scalar_select %p522, %s33, 1
          %s524 = smul.addr %s523, 2
          %s525 = smul.addr %s524, 2
          %s526 = scalar_lea.vmem %s0, %s525
        $region32: #{vitmae_core_forward.1} parent=27 // pred_fallthru
          _
        // Predicated region
        $region33: #{vitmae_core_forward.1} parent=27 // pred_check
          %p527 = pneg %p84
        $region34: #{vitmae_core_forward.1} parent=27 // pred_check_branch
          %529 = sbr.rel (%p527) target = $region36
        $region35: #{vitmae_core_forward.1} parent=27 // pred_region
          %p530 = scmp.lt.s32.totalorder %s33, 1
          %s531 = scalar_select %p530, %s33, 1
          %s532 = smul.addr %s531, 2
          %s533 = scalar_lea.vmem %s1, %s532
        $region36: #{vitmae_core_forward.1} parent=27 // pred_fallthru
          _
        // Predicated region
        $region37: #{vitmae_core_forward.1} parent=27 // pred_check
          %p534 = pneg %p131
        $region38: #{vitmae_core_forward.1} parent=27 // pred_check_branch
          %536 = sbr.rel (%p534) target = $region40
        $region39: #{vitmae_core_forward.1} parent=27 // pred_region
          %p537 = scmp.lt.s32.totalorder %s34, 1
          %s538 = scalar_select %p537, %s34, 1
          %s539 = scalar_lea.vmem %s3, %s538
        $region40: #{vitmae_core_forward.1} parent=27 // pred_fallthru
          _
        // Predicated region
        $region41: #{vitmae_core_forward.1} parent=27 // pred_check
          %p540 = pneg %p157
        $region42: #{vitmae_core_forward.1} parent=27 // pred_check_branch
          %542 = sbr.rel (%p540) target = $region44
        $region43: #{vitmae_core_forward.1} parent=27 // pred_region
          %p543 = scmp.lt.s32.totalorder %s34, 1
          %s544 = scalar_select %p543, %s34, 1
          %s545 = scalar_lea.vmem %s4, %s544
        $region44: #{vitmae_core_forward.1} parent=27 // pred_fallthru
          _
        // Predicated region
        $region45: #{vitmae_core_forward.1} parent=27 // pred_check
          %p546 = pneg %p183
        $region46: #{vitmae_core_forward.1} parent=27 // pred_check_branch
          %548 = sbr.rel (%p546) target = $region48
        $region47: #{vitmae_core_forward.1} parent=27 // pred_region
          %p549 = scmp.lt.s32.totalorder %s34, 1
          %s550 = scalar_select %p549, %s34, 1
          %s551 = smul.addr %s550, 4
          %s552 = smul.addr %s551, 4
          %s553 = scalar_lea.vmem %s5, %s552
        $region48: #{vitmae_core_forward.1} parent=27 // pred_fallthru
          _
        // Predicated region
        $region49: #{vitmae_core_forward.1} parent=27 // pred_check
          %p554 = pneg %p209
        $region50: #{vitmae_core_forward.1} parent=27 // pred_check_branch
          %556 = sbr.rel (%p554) target = $region52
        $region51: #{vitmae_core_forward.1} parent=27 // pred_region
          %p557 = scmp.lt.s32.totalorder %s34, 1
          %s558 = scalar_select %p557, %s34, 1
          %s559 = scalar_lea.vmem %s6, %s558
        $region52: #{vitmae_core_forward.1} parent=27 // pred_fallthru
          _
        // Predicated region
        $region53: #{vitmae_core_forward.1} parent=27 // pred_check
          %p560 = pneg %p235
        $region54: #{vitmae_core_forward.1} parent=27 // pred_check_branch
          %562 = sbr.rel (%p560) target = $region56
        $region55: #{vitmae_core_forward.1} parent=27 // pred_region
          %p563 = scmp.lt.s32.totalorder %s34, 1
          %s564 = scalar_select %p563, %s34, 1
          %s565 = smul.addr %s564, 4
          %s566 = smul.addr %s565, 4
          %s567 = scalar_lea.vmem %s7, %s566
        $region56: #{vitmae_core_forward.1} parent=27 // pred_fallthru
          _
        // Predicated region
        $region57: #{vitmae_core_forward.1} parent=27 // pred_check
          %p568 = pneg %p261
        $region58: #{vitmae_core_forward.1} parent=27 // pred_check_branch
          %570 = sbr.rel (%p568) target = $region60
        $region59: #{vitmae_core_forward.1} parent=27 // pred_region
          %p571 = scmp.lt.s32.totalorder %s34, 1
          %s572 = scalar_select %p571, %s34, 1
          %s573 = scalar_lea.vmem %s8, %s572
        $region60: #{vitmae_core_forward.1} parent=27 // pred_fallthru
          _
        // Predicated region
        $region61: #{vitmae_core_forward.1} parent=27 // pred_check
          %p574 = pneg %p287
        $region62: #{vitmae_core_forward.1} parent=27 // pred_check_branch
          %576 = sbr.rel (%p574) target = $region64
        $region63: #{vitmae_core_forward.1} parent=27 // pred_region
          %p577 = scmp.lt.s32.totalorder %s34, 1
          %s578 = scalar_select %p577, %s34, 1
          %s579 = scalar_lea.vmem %s9, %s578
        $region64: #{vitmae_core_forward.1} parent=27 // pred_fallthru
          _
        // Predicated region
        $region65: #{vitmae_core_forward.1} parent=27 // pred_check
          %p580 = pneg %p313
        $region66: #{vitmae_core_forward.1} parent=27 // pred_check_branch
          %582 = sbr.rel (%p580) target = $region68
        $region67: #{vitmae_core_forward.1} parent=27 // pred_region
          %p583 = scmp.lt.s32.totalorder %s34, 1
          %s584 = scalar_select %p583, %s34, 1
          %s585 = scalar_lea.vmem %s10, %s584
        $region68: #{vitmae_core_forward.1} parent=27 // pred_fallthru
          _
        // Predicated region
        $region69: #{vitmae_core_forward.1} parent=27 // pred_check
          %p586 = pneg %p339
        $region70: #{vitmae_core_forward.1} parent=27 // pred_check_branch
          %588 = sbr.rel (%p586) target = $region72
        $region71: #{vitmae_core_forward.1} parent=27 // pred_region
          %p589 = scmp.lt.s32.totalorder %s34, 1
          %s590 = scalar_select %p589, %s34, 1
          %s591 = smul.addr %s590, 4
          %s592 = smul.addr %s591, 4
          %s593 = scalar_lea.vmem %s11, %s592
        $region72: #{vitmae_core_forward.1} parent=27 // pred_fallthru
          _
        // Predicated region
        $region73: #{vitmae_core_forward.1} parent=27 // pred_check
          %p594 = pneg %p365
        $region74: #{vitmae_core_forward.1} parent=27 // pred_check_branch
          %596 = sbr.rel (%p594) target = $region76
        $region75: #{vitmae_core_forward.1} parent=27 // pred_region
          %p597 = scmp.lt.s32.totalorder %s34, 1
          %s598 = scalar_select %p597, %s34, 1
          %s599 = scalar_lea.vmem %s12, %s598
        $region76: #{vitmae_core_forward.1} parent=27 // pred_fallthru
          _
        // Predicated region
        $region77: #{vitmae_core_forward.1} parent=27 // pred_check
          %p600 = pneg %p391
        $region78: #{vitmae_core_forward.1} parent=27 // pred_check_branch
          %602 = sbr.rel (%p600) target = $region80
        $region79: #{vitmae_core_forward.1} parent=27 // pred_region
          %p603 = scmp.lt.s32.totalorder %s34, 1
          %s604 = scalar_select %p603, %s34, 1
          %s605 = smul.addr %s604, 8
          %s606 = smul.addr %s605, 4
          %s607 = scalar_lea.vmem %s13, %s606
        $region80: #{vitmae_core_forward.1} parent=27 // pred_fallthru
          _
        // Predicated region
        $region81: #{vitmae_core_forward.1} parent=27 // pred_check
          %p608 = pneg %p417
        $region82: #{vitmae_core_forward.1} parent=27 // pred_check_branch
          %610 = sbr.rel (%p608) target = $region84
        $region83: #{vitmae_core_forward.1} parent=27 // pred_region
          %p611 = scmp.lt.s32.totalorder %s34, 1
          %s612 = scalar_select %p611, %s34, 1
          %s613 = scalar_lea.vmem %s14, %s612
        $region84: #{vitmae_core_forward.1} parent=27 // pred_fallthru
          _
      $region28: #{vitmae_core_forward.1} parent=5 // pred_fallthru
        _
      %p614 = scmp.le.s32.totalorder 1, %s26
      %p615 = scmp.lt.s32.totalorder %s26, 5
      %p616 = pnand %p614, %p615
      %p617 = pneg %p616
      // Predicated region
      $region85: #{vitmae_core_forward.1} parent=5 // pred_check
        _
      $region86: #{vitmae_core_forward.1} parent=5 // pred_check_branch
        %619 = sbr.rel (%p616) target = $region88
      $region87: #{vitmae_core_forward.1} parent=5 // pred_region
        %s620 = ssub.s32 %s26, 1
        %p621 = scmp.lt.s32.totalorder %s35, 1
        %s622 = scalar_select %p621, %s35, 1
        %s623 = smul.addr %s622, 2
        %s624 = smul.addr %s623, 2
        %s625 = scalar_lea.vmem %s0, %s624
        %p626 = pneg %p64
        %p627 = pneg %p61
        %p628 = scmp.lt.s32.totalorder %s35, 1
        %s629 = scalar_select %p628, %s35, 1
        %s630 = smul.addr %s629, 2
        %s631 = scalar_lea.vmem %s1, %s630
        %p632 = pneg %p90
        %p633 = pneg %p87
        %p634 = pneg %p111
        %p635 = pneg %p108
        %p636 = scmp.lt.s32.totalorder %s36, 1
        %s637 = scalar_select %p636, %s36, 1
        %s638 = scalar_lea.vmem %s3, %s637
        %p639 = pneg %p137
        %p640 = pneg %p134
        %p641 = scmp.lt.s32.totalorder %s36, 1
        %s642 = scalar_select %p641, %s36, 1
        %s643 = scalar_lea.vmem %s4, %s642
        %p644 = pneg %p163
        %p645 = pneg %p160
        %p646 = scmp.lt.s32.totalorder %s36, 1
        %s647 = scalar_select %p646, %s36, 1
        %s648 = smul.addr %s647, 4
        %s649 = smul.addr %s648, 4
        %s650 = scalar_lea.vmem %s5, %s649
        %p651 = pneg %p189
        %p652 = pneg %p186
        %p653 = scmp.lt.s32.totalorder %s36, 1
        %s654 = scalar_select %p653, %s36, 1
        %s655 = scalar_lea.vmem %s6, %s654
        %p656 = pneg %p215
        %p657 = pneg %p212
        %p658 = scmp.lt.s32.totalorder %s36, 1
        %s659 = scalar_select %p658, %s36, 1
        %s660 = smul.addr %s659, 4
        %s661 = smul.addr %s660, 4
        %s662 = scalar_lea.vmem %s7, %s661
        %p663 = pneg %p241
        %p664 = pneg %p238
        %p665 = scmp.lt.s32.totalorder %s36, 1
        %s666 = scalar_select %p665, %s36, 1
        %s667 = scalar_lea.vmem %s8, %s666
        %p668 = pneg %p267
        %p669 = pneg %p264
        %p670 = scmp.lt.s32.totalorder %s36, 1
        %s671 = scalar_select %p670, %s36, 1
        %s672 = scalar_lea.vmem %s9, %s671
        %p673 = pneg %p293
        %p674 = pneg %p290
        %p675 = scmp.lt.s32.totalorder %s36, 1
        %s676 = scalar_select %p675, %s36, 1
        %s677 = scalar_lea.vmem %s10, %s676
        %p678 = pneg %p319
        %p679 = pneg %p316
        %p680 = scmp.lt.s32.totalorder %s36, 1
        %s681 = scalar_select %p680, %s36, 1
        %s682 = smul.addr %s681, 4
        %s683 = smul.addr %s682, 4
        %s684 = scalar_lea.vmem %s11, %s683
        %p685 = pneg %p345
        %p686 = pneg %p342
        %p687 = scmp.lt.s32.totalorder %s36, 1
        %s688 = scalar_select %p687, %s36, 1
        %s689 = scalar_lea.vmem %s12, %s688
        %p690 = pneg %p371
        %p691 = pneg %p368
        %p692 = scmp.lt.s32.totalorder %s36, 1
        %s693 = scalar_select %p692, %s36, 1
        %s694 = smul.addr %s693, 8
        %s695 = smul.addr %s694, 4
        %s696 = scalar_lea.vmem %s13, %s695
        %p697 = pneg %p397
        %p698 = pneg %p394
        %p699 = scmp.lt.s32.totalorder %s36, 1
        %s700 = scalar_select %p699, %s36, 1
        %s701 = scalar_lea.vmem %s14, %s700
        %p702 = pneg %p423
        %p703 = pneg %p420
        %p704 = pneg %p444
        %p705 = pneg %p441
        %p706 = pneg %p465
        %p707 = pneg %p462
        %p708 = pneg %p491
        %p709 = pneg %p488
        %s710 = sand.u32 %s478, 1
        %s711 = scalar_lea.sflag [#allocation4], %s710
        %s712 = sand.u32 %s478, 1
        %s713 = scalar_lea.vmem [#allocation3], %s712
        %p714 = scmp.lt.s32.totalorder %s35, 1
        %s715 = scalar_select %p714, %s35, 1
        %s716 = smul.addr %s715, 2
        %s717 = smul.addr %s716, 2
        %s718 = scalar_lea.vmem %s0, %s717
        %p719 = scmp.lt.s32.totalorder %s35, 1
        %s720 = scalar_select %p719, %s35, 1
        %s721 = smul.addr %s720, 2
        %s722 = scalar_lea.vmem %s1, %s721
        %p723 = scmp.lt.s32.totalorder %s36, 1
        %s724 = scalar_select %p723, %s36, 1
        %s725 = scalar_lea.vmem %s3, %s724
        %p726 = scmp.lt.s32.totalorder %s36, 1
        %s727 = scalar_select %p726, %s36, 1
        %s728 = scalar_lea.vmem %s4, %s727
        %p729 = scmp.lt.s32.totalorder %s36, 1
        %s730 = scalar_select %p729, %s36, 1
        %s731 = smul.addr %s730, 4
        %s732 = smul.addr %s731, 4
        %s733 = scalar_lea.vmem %s5, %s732
        %p734 = scmp.lt.s32.totalorder %s36, 1
        %s735 = scalar_select %p734, %s36, 1
        %s736 = scalar_lea.vmem %s6, %s735
        %p737 = scmp.lt.s32.totalorder %s36, 1
        %s738 = scalar_select %p737, %s36, 1
        %s739 = smul.addr %s738, 4
        %s740 = smul.addr %s739, 4
        %s741 = scalar_lea.vmem %s7, %s740
        %p742 = scmp.lt.s32.totalorder %s36, 1
        %s743 = scalar_select %p742, %s36, 1
        %s744 = scalar_lea.vmem %s8, %s743
        %p745 = scmp.lt.s32.totalorder %s36, 1
        %s746 = scalar_select %p745, %s36, 1
        %s747 = scalar_lea.vmem %s9, %s746
        %p748 = scmp.lt.s32.totalorder %s36, 1
        %s749 = scalar_select %p748, %s36, 1
        %s750 = scalar_lea.vmem %s10, %s749
        %p751 = scmp.lt.s32.totalorder %s36, 1
        %s752 = scalar_select %p751, %s36, 1
        %s753 = smul.addr %s752, 4
        %s754 = smul.addr %s753, 4
        %s755 = scalar_lea.vmem %s11, %s754
        %p756 = scmp.lt.s32.totalorder %s36, 1
        %s757 = scalar_select %p756, %s36, 1
        %s758 = scalar_lea.vmem %s12, %s757
        %p759 = scmp.lt.s32.totalorder %s36, 1
        %s760 = scalar_select %p759, %s36, 1
        %s761 = smul.addr %s760, 8
        %s762 = smul.addr %s761, 4
        %s763 = scalar_lea.vmem %s13, %s762
        %p764 = scmp.lt.s32.totalorder %s36, 1
        %s765 = scalar_select %p764, %s36, 1
        %s766 = scalar_lea.vmem %s14, %s765
        %p768 = scmp.eq.s32.totalorder %s36, 0
        // Predicated region
        $region89: #{vitmae_core_forward.1} parent=87 // pred_check
          %p769 = pneg %p768
        $region90: #{vitmae_core_forward.1} parent=87 // pred_check_branch
          %771 = sbr.rel (%p769) target = $region92
        $region91: #{vitmae_core_forward.1} parent=87 // pred_region
          %v772 = vld [vmem:[%s718] sm:$0xf]
          %v775 = vunpack.c.l.s4 1983009808
          %v776 = vunpack.c.0.s8 %v775
          %v777 = vlaneseq
          %v778 = vshrl.u32 %v777, 7
          %v779 = vsub.s32 %v776, %v778
          %v780 = vrot.slane %v772, %v779
          %v781 = vcombine.high %v780, %v780
          %v784 = vpack.c.bf16 %v780, %v780
          %v785 = vpack.c.bf16 %v781, %v781
          %v786 = vld [vmem:[%s2] sm:$0xf]
          %v787 = vld [vmem:[%s2 + $0x4] sm:$0xf]
          %v788 = vld [vmem:[%s2 + $0x8] sm:$0xf]
          %v789 = vld [vmem:[%s2 + $0xc] sm:$0xf]
          %v790 = vld [vmem:[%s2 + $0x10] sm:$0xf]
          %v791 = vld [vmem:[%s2 + $0x14] sm:$0xf]
          %v792 = vld [vmem:[%s2 + $0x18] sm:$0xf]
          %v793 = vld [vmem:[%s2 + $0x1c] sm:$0xf]
          %v794 = vld [vmem:[%s2 + $0x20] sm:$0xf]
          %v795 = vld [vmem:[%s2 + $0x24] sm:$0xf]
          %v796 = vld [vmem:[%s2 + $0x28] sm:$0xf]
          %v797 = vld [vmem:[%s2 + $0x2c] sm:$0xf]
          %v798 = vld [vmem:[%s2 + $0x30] sm:$0xf]
          %v799 = vld [vmem:[%s2 + $0x34] sm:$0xf]
          %v800 = vld [vmem:[%s2 + $0x38] sm:$0xf]
          %v801 = vld [vmem:[%s2 + $0x3c] sm:$0xf]
          %v802 = vld [vmem:[%s2 + $0x40] sm:$0xf]
          %v803 = vld [vmem:[%s2 + $0x44] sm:$0xf]
          %v804 = vld [vmem:[%s2 + $0x48] sm:$0xf]
          %v805 = vld [vmem:[%s2 + $0x4c] sm:$0xf]
          %v806 = vld [vmem:[%s2 + $0x50] sm:$0xf]
          %v807 = vld [vmem:[%s2 + $0x54] sm:$0xf]
          %v808 = vld [vmem:[%s2 + $0x58] sm:$0xf]
          %v809 = vld [vmem:[%s2 + $0x5c] sm:$0xf]
          %v810 = vld [vmem:[%s722] sm:$0x3]
          %v835 = vunpack.c.l.b16 %v786
          %v836 = vunpack.c.l.b16 %v787
          %v837 = vunpack.c.l.b16 %v788
          %v838 = vunpack.c.l.b16 %v789
          %v839 = vunpack.c.l.b16 %v790
          %v840 = vunpack.c.l.b16 %v791
          %v841 = vunpack.c.l.b16 %v792
          %v842 = vunpack.c.l.b16 %v793
          %v843 = vunpack.c.l.b16 %v794
          %v844 = vunpack.c.l.b16 %v795
          %v845 = vunpack.c.l.b16 %v796
          %v846 = vunpack.c.l.b16 %v797
          %v847 = vunpack.c.l.b16 %v798
          %v848 = vunpack.c.l.b16 %v799
          %v849 = vunpack.c.l.b16 %v800
          %v850 = vunpack.c.l.b16 %v801
          %v851 = vunpack.c.l.b16 %v802
          %v852 = vunpack.c.l.b16 %v803
          %v853 = vunpack.c.l.b16 %v804
          %v854 = vunpack.c.l.b16 %v805
          %v855 = vunpack.c.l.b16 %v806
          %v856 = vunpack.c.l.b16 %v807
          %v857 = vunpack.c.l.b16 %v808
          %v858 = vunpack.c.l.b16 %v809
          %v859 = vpack.c.b16 %v836, %v835
          %v860 = vpack.c.b16 %v838, %v837
          %v861 = vpack.c.b16 %v840, %v839
          %v862 = vpack.c.b16 %v842, %v841
          %v863 = vpack.c.b16 %v844, %v843
          %v864 = vpack.c.b16 %v846, %v845
          %v865 = vpack.c.b16 %v848, %v847
          %v866 = vpack.c.b16 %v850, %v849
          %v867 = vpack.c.b16 %v852, %v851
          %v868 = vpack.c.b16 %v854, %v853
          %v869 = vpack.c.b16 %v856, %v855
          %v870 = vpack.c.b16 %v858, %v857
          %vm883 = vcmask 523264
          %v885 = vsel %vm883, %v785, 0
          %887 = vmatprep.subr.bf16.mxu0 0
          %888 = vmatpush1.bf16.msra.mxu0 %v866
          %889 = vmatprep.subr.bf16.mxu0 0
          %890 = vmatpush1.bf16.msra.mxu0 %v865
          %891 = vmatprep.subr.bf16.mxu0 0
          %892 = vmatpush1.bf16.msra.mxu0 %v864
          %893 = vmatprep.subr.bf16.mxu0 0
          %894 = vmatpush1.bf16.msra.mxu0 %v863
          %895 = vmatprep.subr.bf16.mxu0 0
          %896 = vmatpush1.bf16.msra.mxu0 %v862
          %897 = vmatprep.subr.bf16.mxu0 0
          %898 = vmatpush1.bf16.msra.mxu0 %v861
          %899 = vmatprep.subr.bf16.mxu0 0
          %900 = vmatpush1.bf16.msra.mxu0 %v860
          %901 = vmatprep.subr.bf16.mxu0 0
          %902 = vmatpush1.bf16.msra.mxu0 %v859
          %903 = vmatprep.subr.bf16.mxu0 0
          %904 = vmatpush2.bf16.msra.mxu0 0
          %905 = vmatprep.subr.bf16.mxu0 0
          %906 = vmatpush2.bf16.msra.mxu0 0
          %907 = vmatprep.subr.bf16.mxu0 0
          %908 = vmatpush2.bf16.msra.mxu0 0
          %909 = vmatprep.subr.bf16.mxu0 0
          %910 = vmatpush2.bf16.msra.mxu0 0
          %911 = vmatprep.subr.bf16.mxu0 0
          %912 = vmatpush2.bf16.msra.mxu0 %v870
          %913 = vmatprep.subr.bf16.mxu0 0
          %914 = vmatpush2.bf16.msra.mxu0 %v869
          %915 = vmatprep.subr.bf16.mxu0 0
          %916 = vmatpush2.bf16.msra.mxu0 %v868
          %917 = vmatprep.subr.bf16.mxu0 0
          %918 = vmatpush2.bf16.msra.mxu0 %v867
          %919 = vmatprep.mubr.bf16.mxu0 %v885
          %920 = vmatmul.mubr.bf16.gmra.mxu0 %v784
          %v921 = vpop.f32.mrf.mxu0
          %v922 = vadd.f32 %v810, %v921
          %v923 = vpop.f32.mrf.mxu0
          %v924 = vpop.f32.mrf.mxu0
          %v925 = vpop.f32.mrf.mxu0
          %926 = vdwg.mxu0
          %vm927 = vcmask 254976
          %928 = vst.msk [vmem:[#allocation2] sm:$0x3] %vm927, %v922
        $region92: #{vitmae_core_forward.1} parent=87 // pred_fallthru
          _
        %v929 = vld [vmem:[#allocation2] sm:$0x3]
        %v930 = vld [vmem:[%s725] sm:$0x1]
        %v931 = vld [vmem:[%s728] sm:$0x1]
        %vm932 = vcmask 254976
        %v933 = vsel %vm932, %v929, 0.0
        %934 = vadd.xlane.f32.xlu0 %v933
        %v935 = vpop.xlane.xlu0 %934
        %v936 = vrcp.pop 32.0
        %v937 = vmul.f32 %v935, %v936
        %v938 = vmul.f32 %v929, %v929
        %v939 = vsel %vm932, %v938, 0.0
        %940 = vadd.xlane.f32.xlu0 %v939
        %v941 = vpop.xlane.xlu0 %940
        %v942 = vmul.f32 %v941, %v936
        %v943 = vmul.f32 %v937, %v937
        %v944 = vsub.f32 %v942, %v943
        %v945 = vmax.f32 %v944, 0.0
        %v946 = vsub.f32 %v929, %v937
        %v947 = vadd.f32 %v945, 1e-12
        %v948 = vrsqrt.pop %v947
        %v949 = vmul.f32 %v946, %v948
        %v951 = vlaneseq
        %v952 = vshrl.u32 %v951, 7
        %v953 = vsub.s32 0, %v952
        %v954 = vrot.slane %v930, %v953
        %v956 = vmul.f32 %v949, %v954
        %v958 = vlaneseq
        %v959 = vshrl.u32 %v958, 7
        %v960 = vsub.s32 0, %v959
        %v961 = vrot.slane %v931, %v960
        %v963 = vadd.f32 %v956, %v961
        %v964 = vpack.c.bf16 %v963, %v963
        %v965 = vld [vmem:[%s733] sm:$0xf]
        %v966 = vld [vmem:[%s733 + $0x4] sm:$0xf]
        %v967 = vld [vmem:[%s733 + $0x8] sm:$0xf]
        %v968 = vld [vmem:[%s733 + $0xc] sm:$0xf]
        %v969 = vld [vmem:[%s736] sm:$0x1]
        %v971 = vlaneseq
        %v972 = vshrl.u32 %v971, 7
        %v973 = vsub.s32 0, %v972
        %v974 = vrot.slane %v969, %v973
        %v980 = vunpack.c.l.b16 %v965
        %v981 = vunpack.c.l.b16 %v966
        %v982 = vunpack.c.l.b16 %v967
        %v983 = vunpack.c.l.b16 %v968
        %v984 = vpack.c.b16 %v981, %v980
        %v985 = vpack.c.b16 %v983, %v982
        %vm988 = vcmask 261120
        %v990 = vsel %vm988, %v964, 0
        %992 = vmatprep.subr.bf16.mxu0 0
        %993 = vmatpush1.bf16.msra.mxu0 0
        %994 = vmatprep.subr.bf16.mxu0 0
        %995 = vmatpush1.bf16.msra.mxu0 0
        %996 = vmatprep.subr.bf16.mxu0 0
        %997 = vmatpush1.bf16.msra.mxu0 0
        %998 = vmatprep.subr.bf16.mxu0 0
        %999 = vmatpush1.bf16.msra.mxu0 0
        %1000 = vmatprep.subr.bf16.mxu0 0
        %1001 = vmatpush1.bf16.msra.mxu0 0
        %1002 = vmatprep.subr.bf16.mxu0 0
        %1003 = vmatpush1.bf16.msra.mxu0 0
        %1004 = vmatprep.subr.bf16.mxu0 0
        %1005 = vmatpush1.bf16.msra.mxu0 %v985
        %1006 = vmatprep.subr.bf16.mxu0 0
        %1007 = vmatpush1.bf16.msra.mxu0 %v984
        %1008 = vmatprep.subr.bf16.mxu0 0
        %1009 = vmatpush2.bf16.msra.mxu0 0
        %1010 = vmatprep.subr.bf16.mxu0 0
        %1011 = vmatpush2.bf16.msra.mxu0 0
        %1012 = vmatprep.subr.bf16.mxu0 0
        %1013 = vmatpush2.bf16.msra.mxu0 0
        %1014 = vmatprep.subr.bf16.mxu0 0
        %1015 = vmatpush2.bf16.msra.mxu0 0
        %1016 = vmatprep.subr.bf16.mxu0 0
        %1017 = vmatpush2.bf16.msra.mxu0 0
        %1018 = vmatprep.subr.bf16.mxu0 0
        %1019 = vmatpush2.bf16.msra.mxu0 0
        %1020 = vmatprep.subr.bf16.mxu0 0
        %1021 = vmatpush2.bf16.msra.mxu0 0
        %1022 = vmatprep.subr.bf16.mxu0 0
        %1023 = vmatpush2.bf16.msra.mxu0 0
        %1024 = vmatprep.mubr.bf16.mxu0 0
        %1025 = vmatmul.mubr.bf16.gmra.mxu0 %v990
        %v1026 = vpop.f32.mrf.mxu0
        %v1027 = vadd.f32 %v974, %v1026
        %v1028 = vpop.f32.mrf.mxu0
        %v1029 = vpop.f32.mrf.mxu0
        %v1030 = vpop.f32.mrf.mxu0
        %1031 = vdwg.mxu0
        %1033 = vrot.lane.b32.xlu0 %v1027, 120
        %v1034 = vpop.permute.xlu0 %1033
        %1036 = vrot.lane.b32.xlu0 %v1027, 112
        %v1037 = vpop.permute.xlu0 %1036
        %1039 = vrot.lane.b32.xlu0 %v1027, 104
        %v1040 = vpop.permute.xlu0 %1039
        %v1042 = vcombine.low %v1027, %v1037
        %v1044 = vunpack.c.l.s4 1983009808
        %v1045 = vunpack.c.0.s8 %v1044
        %v1046 = vlaneseq
        %v1047 = vshrl.u32 %v1046, 7
        %v1048 = vsub.s32 %v1045, %v1047
        %v1049 = vrot.slane %v1042, %v1048
        %v1050 = vcombine.low %v1034, %v1040
        %v1052 = vunpack.c.l.s4 1983009808
        %v1053 = vunpack.c.0.s8 %v1052
        %v1054 = vlaneseq
        %v1055 = vshrl.u32 %v1054, 7
        %v1056 = vsub.s32 %v1053, %v1055
        %v1057 = vrot.slane %v1050, %v1056
        %v1058 = vcombine.low %v1049, %v1057
        %v1060 = vunpack.c.l.s4 1934713408
        %v1061 = vunpack.c.0.s8 %v1060
        %v1062 = vlaneseq
        %v1063 = vshrl.u32 %v1062, 7
        %v1064 = vsub.s32 %v1061, %v1063
        %v1065 = vrot.slane %v1058, %v1064
        %v1067 = vunpack.c.l.s4 1983009808
        %v1068 = vunpack.c.0.s8 %v1067
        %v1069 = vlaneseq
        %v1070 = vshrl.u32 %v1069, 7
        %v1071 = vsub.s32 %v1068, %v1070
        %v1072 = vrot.slane %v1065, %v1071
        %v1073 = vcombine.high %v1065, 0.0
        %v1075 = vunpack.c.l.s4 1983009808
        %v1076 = vunpack.c.0.s8 %v1075
        %v1077 = vlaneseq
        %v1078 = vshrl.u32 %v1077, 7
        %v1079 = vsub.s32 %v1076, %v1078
        %v1080 = vrot.slane %v1073, %v1079
        %v1081 = vcombine.low %v1072, %v1080
        %v1082 = vcombine.high %v1072, %v1080
        %v1084 = vunpack.c.l.s4 1934713408
        %v1085 = vunpack.c.0.s8 %v1084
        %v1086 = vlaneseq
        %v1087 = vshrl.u32 %v1086, 7
        %v1088 = vsub.s32 %v1085, %v1087
        %v1089 = vrot.slane %v1081, %v1088
        %v1091 = vunpack.c.l.s4 1934713408
        %v1092 = vunpack.c.0.s8 %v1091
        %v1093 = vlaneseq
        %v1094 = vshrl.u32 %v1093, 7
        %v1095 = vsub.s32 %v1092, %v1094
        %v1096 = vrot.slane %v1082, %v1095
        %v1097 = vcombine.high %v1089, 0.0
        %v1098 = vcombine.high %v1096, 0.0
        %1099 = vrot.lane.b32.xlu0 %v1027, 96
        %v1100 = vpop.permute.xlu0 %1099
        %1101 = vrot.lane.b32.xlu0 %v1034, 96
        %v1102 = vpop.permute.xlu0 %1101
        %1103 = vrot.lane.b32.xlu0 %v1037, 96
        %v1104 = vpop.permute.xlu0 %1103
        %1105 = vrot.lane.b32.xlu0 %v1040, 96
        %v1106 = vpop.permute.xlu0 %1105
        %v1111 = vcombine.low %v1100, %v1104
        %v1113 = vunpack.c.l.s4 1983009808
        %v1114 = vunpack.c.0.s8 %v1113
        %v1115 = vlaneseq
        %v1116 = vshrl.u32 %v1115, 7
        %v1117 = vsub.s32 %v1114, %v1116
        %v1118 = vrot.slane %v1111, %v1117
        %v1119 = vcombine.low %v1102, %v1106
        %v1121 = vunpack.c.l.s4 1983009808
        %v1122 = vunpack.c.0.s8 %v1121
        %v1123 = vlaneseq
        %v1124 = vshrl.u32 %v1123, 7
        %v1125 = vsub.s32 %v1122, %v1124
        %v1126 = vrot.slane %v1119, %v1125
        %v1127 = vcombine.low %v1118, %v1126
        %v1129 = vunpack.c.l.s4 1934713408
        %v1130 = vunpack.c.0.s8 %v1129
        %v1131 = vlaneseq
        %v1132 = vshrl.u32 %v1131, 7
        %v1133 = vsub.s32 %v1130, %v1132
        %v1134 = vrot.slane %v1127, %v1133
        %v1136 = vunpack.c.l.s4 1983009808
        %v1137 = vunpack.c.0.s8 %v1136
        %v1138 = vlaneseq
        %v1139 = vshrl.u32 %v1138, 7
        %v1140 = vsub.s32 %v1137, %v1139
        %v1141 = vrot.slane %v1134, %v1140
        %v1142 = vcombine.high %v1134, 0.0
        %v1144 = vunpack.c.l.s4 1983009808
        %v1145 = vunpack.c.0.s8 %v1144
        %v1146 = vlaneseq
        %v1147 = vshrl.u32 %v1146, 7
        %v1148 = vsub.s32 %v1145, %v1147
        %v1149 = vrot.slane %v1142, %v1148
        %v1150 = vcombine.low %v1141, %v1149
        %v1151 = vcombine.high %v1141, %v1149
        %v1153 = vunpack.c.l.s4 1934713408
        %v1154 = vunpack.c.0.s8 %v1153
        %v1155 = vlaneseq
        %v1156 = vshrl.u32 %v1155, 7
        %v1157 = vsub.s32 %v1154, %v1156
        %v1158 = vrot.slane %v1150, %v1157
        %v1160 = vunpack.c.l.s4 1934713408
        %v1161 = vunpack.c.0.s8 %v1160
        %v1162 = vlaneseq
        %v1163 = vshrl.u32 %v1162, 7
        %v1164 = vsub.s32 %v1161, %v1163
        %v1165 = vrot.slane %v1151, %v1164
        %v1166 = vcombine.high %v1158, 0.0
        %v1167 = vcombine.high %v1165, 0.0
        %1168 = vrot.lane.b32.xlu0 %v1027, 64
        %v1169 = vpop.permute.xlu0 %1168
        %1170 = vrot.lane.b32.xlu0 %v1034, 64
        %v1171 = vpop.permute.xlu0 %1170
        %1172 = vrot.lane.b32.xlu0 %v1037, 64
        %v1173 = vpop.permute.xlu0 %1172
        %1174 = vrot.lane.b32.xlu0 %v1040, 64
        %v1175 = vpop.permute.xlu0 %1174
        %v1180 = vcombine.low %v1169, %v1173
        %v1182 = vunpack.c.l.s4 1983009808
        %v1183 = vunpack.c.0.s8 %v1182
        %v1184 = vlaneseq
        %v1185 = vshrl.u32 %v1184, 7
        %v1186 = vsub.s32 %v1183, %v1185
        %v1187 = vrot.slane %v1180, %v1186
        %v1188 = vcombine.low %v1171, %v1175
        %v1190 = vunpack.c.l.s4 1983009808
        %v1191 = vunpack.c.0.s8 %v1190
        %v1192 = vlaneseq
        %v1193 = vshrl.u32 %v1192, 7
        %v1194 = vsub.s32 %v1191, %v1193
        %v1195 = vrot.slane %v1188, %v1194
        %v1196 = vcombine.low %v1187, %v1195
        %v1198 = vunpack.c.l.s4 1934713408
        %v1199 = vunpack.c.0.s8 %v1198
        %v1200 = vlaneseq
        %v1201 = vshrl.u32 %v1200, 7
        %v1202 = vsub.s32 %v1199, %v1201
        %v1203 = vrot.slane %v1196, %v1202
        %v1205 = vunpack.c.l.s4 1983009808
        %v1206 = vunpack.c.0.s8 %v1205
        %v1207 = vlaneseq
        %v1208 = vshrl.u32 %v1207, 7
        %v1209 = vsub.s32 %v1206, %v1208
        %v1210 = vrot.slane %v1203, %v1209
        %v1211 = vcombine.high %v1203, 0.0
        %v1213 = vunpack.c.l.s4 1983009808
        %v1214 = vunpack.c.0.s8 %v1213
        %v1215 = vlaneseq
        %v1216 = vshrl.u32 %v1215, 7
        %v1217 = vsub.s32 %v1214, %v1216
        %v1218 = vrot.slane %v1211, %v1217
        %v1219 = vcombine.low %v1210, %v1218
        %v1220 = vcombine.high %v1210, %v1218
        %v1222 = vunpack.c.l.s4 1934713408
        %v1223 = vunpack.c.0.s8 %v1222
        %v1224 = vlaneseq
        %v1225 = vshrl.u32 %v1224, 7
        %v1226 = vsub.s32 %v1223, %v1225
        %v1227 = vrot.slane %v1219, %v1226
        %v1229 = vunpack.c.l.s4 1934713408
        %v1230 = vunpack.c.0.s8 %v1229
        %v1231 = vlaneseq
        %v1232 = vshrl.u32 %v1231, 7
        %v1233 = vsub.s32 %v1230, %v1232
        %v1234 = vrot.slane %v1220, %v1233
        %v1235 = vcombine.high %v1227, 0.0
        %v1236 = vcombine.high %v1234, 0.0
        %v1237 = vpack.c.bf16 %v1089, %v1089
        %v1238 = vpack.c.bf16 %v1097, %v1097
        %v1239 = vpack.c.bf16 %v1096, %v1096
        %v1240 = vpack.c.bf16 %v1098, %v1098
        %v1241 = vpack.c.bf16 %v1158, %v1158
        %v1242 = vpack.c.bf16 %v1166, %v1166
        %v1243 = vpack.c.bf16 %v1165, %v1165
        %v1244 = vpack.c.bf16 %v1167, %v1167
        %vm1245 = vcmask 64512
        %v1247 = vsel %vm1245, %v1237, 0
        %v1250 = vsel %vm1245, %v1241, 0
        %1252 = vmatprep.subr.bf16.mxu0 0
        %1253 = vmatpush1.bf16.xpose.msra.mxu0 0
        %1254 = vmatprep.subr.bf16.mxu0 0
        %1255 = vmatpush1.bf16.xpose.msra.mxu0 0
        %1256 = vmatprep.subr.bf16.mxu0 0
        %1257 = vmatpush1.bf16.xpose.msra.mxu0 0
        %1258 = vmatprep.subr.bf16.mxu0 0
        %1259 = vmatpush1.bf16.xpose.msra.mxu0 0
        %1260 = vmatprep.subr.bf16.mxu0 0
        %1261 = vmatpush1.bf16.xpose.msra.mxu0 0
        %1262 = vmatprep.subr.bf16.mxu0 0
        %1263 = vmatpush1.bf16.xpose.msra.mxu0 0
        %1264 = vmatprep.subr.bf16.mxu0 0
        %1265 = vmatpush1.bf16.xpose.msra.mxu0 0
        %1266 = vmatprep.subr.bf16.mxu0 0
        %1267 = vmatpush1.bf16.xpose.msra.mxu0 %v1250
        %1268 = vmatprep.subr.bf16.mxu0 0
        %1269 = vmatpush2.bf16.xpose.msra.mxu0 0
        %1270 = vmatprep.subr.bf16.mxu0 0
        %1271 = vmatpush2.bf16.xpose.msra.mxu0 0
        %1272 = vmatprep.subr.bf16.mxu0 0
        %1273 = vmatpush2.bf16.xpose.msra.mxu0 0
        %1274 = vmatprep.subr.bf16.mxu0 0
        %1275 = vmatpush2.bf16.xpose.msra.mxu0 0
        %1276 = vmatprep.subr.bf16.mxu0 0
        %1277 = vmatpush2.bf16.xpose.msra.mxu0 0
        %1278 = vmatprep.subr.bf16.mxu0 0
        %1279 = vmatpush2.bf16.xpose.msra.mxu0 0
        %1280 = vmatprep.subr.bf16.mxu0 0
        %1281 = vmatpush2.bf16.xpose.msra.mxu0 0
        %1282 = vmatprep.subr.bf16.mxu0 0
        %1283 = vmatpush2.bf16.xpose.msra.mxu0 0
        %1284 = vmatprep.mubr.bf16.mxu0 0
        %1285 = vmatmul.mubr.bf16.gmra.mxu0 %v1247
        %v1286 = vpop.f32.mrf.mxu0
        %v1287 = vadd.f32 0.0, %v1286
        %v1288 = vpop.f32.mrf.mxu0
        %v1289 = vpop.f32.mrf.mxu0
        %v1290 = vpop.f32.mrf.mxu0
        %1291 = vdwg.mxu0
        %v1293 = vsel %vm1245, %v1238, 0
        %v1296 = vsel %vm1245, %v1242, 0
        %1298 = vmatprep.subr.bf16.mxu0 0
        %1299 = vmatpush1.bf16.xpose.msra.mxu0 0
        %1300 = vmatprep.subr.bf16.mxu0 0
        %1301 = vmatpush1.bf16.xpose.msra.mxu0 0
        %1302 = vmatprep.subr.bf16.mxu0 0
        %1303 = vmatpush1.bf16.xpose.msra.mxu0 0
        %1304 = vmatprep.subr.bf16.mxu0 0
        %1305 = vmatpush1.bf16.xpose.msra.mxu0 0
        %1306 = vmatprep.subr.bf16.mxu0 0
        %1307 = vmatpush1.bf16.xpose.msra.mxu0 0
        %1308 = vmatprep.subr.bf16.mxu0 0
        %1309 = vmatpush1.bf16.xpose.msra.mxu0 0
        %1310 = vmatprep.subr.bf16.mxu0 0
        %1311 = vmatpush1.bf16.xpose.msra.mxu0 0
        %1312 = vmatprep.subr.bf16.mxu0 0
        %1313 = vmatpush1.bf16.xpose.msra.mxu0 %v1296
        %1314 = vmatprep.subr.bf16.mxu0 0
        %1315 = vmatpush2.bf16.xpose.msra.mxu0 0
        %1316 = vmatprep.subr.bf16.mxu0 0
        %1317 = vmatpush2.bf16.xpose.msra.mxu0 0
        %1318 = vmatprep.subr.bf16.mxu0 0
        %1319 = vmatpush2.bf16.xpose.msra.mxu0 0
        %1320 = vmatprep.subr.bf16.mxu0 0
        %1321 = vmatpush2.bf16.xpose.msra.mxu0 0
        %1322 = vmatprep.subr.bf16.mxu0 0
        %1323 = vmatpush2.bf16.xpose.msra.mxu0 0
        %1324 = vmatprep.subr.bf16.mxu0 0
        %1325 = vmatpush2.bf16.xpose.msra.mxu0 0
        %1326 = vmatprep.subr.bf16.mxu0 0
        %1327 = vmatpush2.bf16.xpose.msra.mxu0 0
        %1328 = vmatprep.subr.bf16.mxu0 0
        %1329 = vmatpush2.bf16.xpose.msra.mxu0 0
        %1330 = vmatprep.mubr.bf16.mxu0 0
        %1331 = vmatmul.mubr.bf16.gmra.mxu0 %v1293
        %v1332 = vpop.f32.mrf.mxu0
        %v1333 = vadd.f32 0.0, %v1332
        %v1334 = vpop.f32.mrf.mxu0
        %v1335 = vpop.f32.mrf.mxu0
        %v1336 = vpop.f32.mrf.mxu0
        %1337 = vdwg.mxu0
        %v1339 = vsel %vm1245, %v1239, 0
        %v1342 = vsel %vm1245, %v1243, 0
        %1344 = vmatprep.subr.bf16.mxu0 0
        %1345 = vmatpush1.bf16.xpose.msra.mxu0 0
        %1346 = vmatprep.subr.bf16.mxu0 0
        %1347 = vmatpush1.bf16.xpose.msra.mxu0 0
        %1348 = vmatprep.subr.bf16.mxu0 0
        %1349 = vmatpush1.bf16.xpose.msra.mxu0 0
        %1350 = vmatprep.subr.bf16.mxu0 0
        %1351 = vmatpush1.bf16.xpose.msra.mxu0 0
        %1352 = vmatprep.subr.bf16.mxu0 0
        %1353 = vmatpush1.bf16.xpose.msra.mxu0 0
        %1354 = vmatprep.subr.bf16.mxu0 0
        %1355 = vmatpush1.bf16.xpose.msra.mxu0 0
        %1356 = vmatprep.subr.bf16.mxu0 0
        %1357 = vmatpush1.bf16.xpose.msra.mxu0 0
        %1358 = vmatprep.subr.bf16.mxu0 0
        %1359 = vmatpush1.bf16.xpose.msra.mxu0 %v1342
        %1360 = vmatprep.subr.bf16.mxu0 0
        %1361 = vmatpush2.bf16.xpose.msra.mxu0 0
        %1362 = vmatprep.subr.bf16.mxu0 0
        %1363 = vmatpush2.bf16.xpose.msra.mxu0 0
        %1364 = vmatprep.subr.bf16.mxu0 0
        %1365 = vmatpush2.bf16.xpose.msra.mxu0 0
        %1366 = vmatprep.subr.bf16.mxu0 0
        %1367 = vmatpush2.bf16.xpose.msra.mxu0 0
        %1368 = vmatprep.subr.bf16.mxu0 0
        %1369 = vmatpush2.bf16.xpose.msra.mxu0 0
        %1370 = vmatprep.subr.bf16.mxu0 0
        %1371 = vmatpush2.bf16.xpose.msra.mxu0 0
        %1372 = vmatprep.subr.bf16.mxu0 0
        %1373 = vmatpush2.bf16.xpose.msra.mxu0 0
        %1374 = vmatprep.subr.bf16.mxu0 0
        %1375 = vmatpush2.bf16.xpose.msra.mxu0 0
        %1376 = vmatprep.mubr.bf16.mxu0 0
        %1377 = vmatmul.mubr.bf16.gmra.mxu0 %v1339
        %v1378 = vpop.f32.mrf.mxu0
        %v1379 = vadd.f32 0.0, %v1378
        %v1380 = vpop.f32.mrf.mxu0
        %v1381 = vpop.f32.mrf.mxu0
        %v1382 = vpop.f32.mrf.mxu0
        %1383 = vdwg.mxu0
        %v1385 = vsel %vm1245, %v1240, 0
        %v1388 = vsel %vm1245, %v1244, 0
        %1390 = vmatprep.subr.bf16.mxu0 0
        %1391 = vmatpush1.bf16.xpose.msra.mxu0 0
        %1392 = vmatprep.subr.bf16.mxu0 0
        %1393 = vmatpush1.bf16.xpose.msra.mxu0 0
        %1394 = vmatprep.subr.bf16.mxu0 0
        %1395 = vmatpush1.bf16.xpose.msra.mxu0 0
        %1396 = vmatprep.subr.bf16.mxu0 0
        %1397 = vmatpush1.bf16.xpose.msra.mxu0 0
        %1398 = vmatprep.subr.bf16.mxu0 0
        %1399 = vmatpush1.bf16.xpose.msra.mxu0 0
        %1400 = vmatprep.subr.bf16.mxu0 0
        %1401 = vmatpush1.bf16.xpose.msra.mxu0 0
        %1402 = vmatprep.subr.bf16.mxu0 0
        %1403 = vmatpush1.bf16.xpose.msra.mxu0 0
        %1404 = vmatprep.subr.bf16.mxu0 0
        %1405 = vmatpush1.bf16.xpose.msra.mxu0 %v1388
        %1406 = vmatprep.subr.bf16.mxu0 0
        %1407 = vmatpush2.bf16.xpose.msra.mxu0 0
        %1408 = vmatprep.subr.bf16.mxu0 0
        %1409 = vmatpush2.bf16.xpose.msra.mxu0 0
        %1410 = vmatprep.subr.bf16.mxu0 0
        %1411 = vmatpush2.bf16.xpose.msra.mxu0 0
        %1412 = vmatprep.subr.bf16.mxu0 0
        %1413 = vmatpush2.bf16.xpose.msra.mxu0 0
        %1414 = vmatprep.subr.bf16.mxu0 0
        %1415 = vmatpush2.bf16.xpose.msra.mxu0 0
        %1416 = vmatprep.subr.bf16.mxu0 0
        %1417 = vmatpush2.bf16.xpose.msra.mxu0 0
        %1418 = vmatprep.subr.bf16.mxu0 0
        %1419 = vmatpush2.bf16.xpose.msra.mxu0 0
        %1420 = vmatprep.subr.bf16.mxu0 0
        %1421 = vmatpush2.bf16.xpose.msra.mxu0 0
        %1422 = vmatprep.mubr.bf16.mxu0 0
        %1423 = vmatmul.mubr.bf16.gmra.mxu0 %v1385
        %v1424 = vpop.f32.mrf.mxu0
        %v1425 = vadd.f32 0.0, %v1424
        %v1426 = vpop.f32.mrf.mxu0
        %v1427 = vpop.f32.mrf.mxu0
        %v1428 = vpop.f32.mrf.mxu0
        %1429 = vdwg.mxu0
        %v1430 = vmul.f32 %v1287, 0.35355338
        %v1431 = vmul.f32 %v1333, 0.35355338
        %v1432 = vmul.f32 %v1379, 0.35355338
        %v1433 = vmul.f32 %v1425, 0.35355338
        %vm1434 = vcmask 9216
        %v1435 = vsel %vm1434, %v1430, -inf
        %1436 = vmax.xlane.f32.xlu0 %v1435
        %v1437 = vpop.xlane.xlu0 %1436
        %v1438 = vsel %vm1434, %v1431, -inf
        %1439 = vmax.xlane.f32.xlu0 %v1438
        %v1440 = vpop.xlane.xlu0 %1439
        %v1441 = vsel %vm1434, %v1432, -inf
        %1442 = vmax.xlane.f32.xlu0 %v1441
        %v1443 = vpop.xlane.xlu0 %1442
        %v1444 = vsel %vm1434, %v1433, -inf
        %1445 = vmax.xlane.f32.xlu0 %v1444
        %v1446 = vpop.xlane.xlu0 %1445
        %v1447 = vsub.f32 %v1430, %v1437
        %v1448 = vsub.f32 %v1431, %v1440
        %v1449 = vsub.f32 %v1432, %v1443
        %v1450 = vsub.f32 %v1433, %v1446
        %v1451 = vmul.f32 %v1447, 1.442695
        %v1452 = vpow.pop %v1451
        %v1453 = vmul.f32 %v1448, 1.442695
        %v1454 = vpow.pop %v1453
        %v1455 = vmul.f32 %v1449, 1.442695
        %v1456 = vpow.pop %v1455
        %v1457 = vmul.f32 %v1450, 1.442695
        %v1458 = vpow.pop %v1457
        %v1459 = vsel %vm1434, %v1452, 0.0
        %1460 = vadd.xlane.f32.xlu0 %v1459
        %v1461 = vpop.xlane.xlu0 %1460
        %v1462 = vsel %vm1434, %v1454, 0.0
        %1463 = vadd.xlane.f32.xlu0 %v1462
        %v1464 = vpop.xlane.xlu0 %1463
        %v1465 = vsel %vm1434, %v1456, 0.0
        %1466 = vadd.xlane.f32.xlu0 %v1465
        %v1467 = vpop.xlane.xlu0 %1466
        %v1468 = vsel %vm1434, %v1458, 0.0
        %1469 = vadd.xlane.f32.xlu0 %v1468
        %v1470 = vpop.xlane.xlu0 %1469
        %v1471 = vrcp.pop %v1461
        %v1472 = vrcp.pop %v1464
        %v1473 = vrcp.pop %v1467
        %v1474 = vrcp.pop %v1470
        %v1475 = vmul.f32 %v1452, %v1471
        %v1476 = vmul.f32 %v1454, %v1472
        %v1477 = vmul.f32 %v1456, %v1473
        %v1478 = vmul.f32 %v1458, %v1474
        %v1479 = vpack.c.bf16 %v1475, %v1475
        %v1480 = vpack.c.bf16 %v1476, %v1476
        %v1481 = vpack.c.bf16 %v1477, %v1477
        %v1482 = vpack.c.bf16 %v1478, %v1478
        %v1483 = vpack.c.bf16 %v1227, %v1227
        %v1484 = vpack.c.bf16 %v1235, %v1235
        %v1485 = vpack.c.bf16 %v1234, %v1234
        %v1486 = vpack.c.bf16 %v1236, %v1236
        %vm1487 = vcmask 15360
        %v1489 = vsel %vm1487, %v1479, 0
        %vm1491 = vcmask 1040384
        %v1493 = vsel %vm1491, %v1483, 0
        %1495 = vmatprep.subr.bf16.mxu0 0
        %1496 = vmatpush1.bf16.msra.mxu0 0
        %1497 = vmatprep.subr.bf16.mxu0 0
        %1498 = vmatpush1.bf16.msra.mxu0 0
        %1499 = vmatprep.subr.bf16.mxu0 0
        %1500 = vmatpush1.bf16.msra.mxu0 0
        %1501 = vmatprep.subr.bf16.mxu0 0
        %1502 = vmatpush1.bf16.msra.mxu0 0
        %1503 = vmatprep.subr.bf16.mxu0 0
        %1504 = vmatpush1.bf16.msra.mxu0 0
        %1505 = vmatprep.subr.bf16.mxu0 0
        %1506 = vmatpush1.bf16.msra.mxu0 0
        %1507 = vmatprep.subr.bf16.mxu0 0
        %1508 = vmatpush1.bf16.msra.mxu0 0
        %1509 = vmatprep.subr.bf16.mxu0 0
        %1510 = vmatpush1.bf16.msra.mxu0 %v1493
        %1511 = vmatprep.subr.bf16.mxu0 0
        %1512 = vmatpush2.bf16.msra.mxu0 0
        %1513 = vmatprep.subr.bf16.mxu0 0
        %1514 = vmatpush2.bf16.msra.mxu0 0
        %1515 = vmatprep.subr.bf16.mxu0 0
        %1516 = vmatpush2.bf16.msra.mxu0 0
        %1517 = vmatprep.subr.bf16.mxu0 0
        %1518 = vmatpush2.bf16.msra.mxu0 0
        %1519 = vmatprep.subr.bf16.mxu0 0
        %1520 = vmatpush2.bf16.msra.mxu0 0
        %1521 = vmatprep.subr.bf16.mxu0 0
        %1522 = vmatpush2.bf16.msra.mxu0 0
        %1523 = vmatprep.subr.bf16.mxu0 0
        %1524 = vmatpush2.bf16.msra.mxu0 0
        %1525 = vmatprep.subr.bf16.mxu0 0
        %1526 = vmatpush2.bf16.msra.mxu0 0
        %1527 = vmatprep.mubr.bf16.mxu0 0
        %1528 = vmatmul.mubr.bf16.gmra.mxu0 %v1489
        %v1529 = vpop.f32.mrf.mxu0
        %v1530 = vadd.f32 0.0, %v1529
        %v1531 = vpop.f32.mrf.mxu0
        %v1532 = vpop.f32.mrf.mxu0
        %v1533 = vpop.f32.mrf.mxu0
        %1534 = vdwg.mxu0
        %v1536 = vsel %vm1487, %v1480, 0
        %v1539 = vsel %vm1491, %v1484, 0
        %1541 = vmatprep.subr.bf16.mxu0 0
        %1542 = vmatpush1.bf16.msra.mxu0 0
        %1543 = vmatprep.subr.bf16.mxu0 0
        %1544 = vmatpush1.bf16.msra.mxu0 0
        %1545 = vmatprep.subr.bf16.mxu0 0
        %1546 = vmatpush1.bf16.msra.mxu0 0
        %1547 = vmatprep.subr.bf16.mxu0 0
        %1548 = vmatpush1.bf16.msra.mxu0 0
        %1549 = vmatprep.subr.bf16.mxu0 0
        %1550 = vmatpush1.bf16.msra.mxu0 0
        %1551 = vmatprep.subr.bf16.mxu0 0
        %1552 = vmatpush1.bf16.msra.mxu0 0
        %1553 = vmatprep.subr.bf16.mxu0 0
        %1554 = vmatpush1.bf16.msra.mxu0 0
        %1555 = vmatprep.subr.bf16.mxu0 0
        %1556 = vmatpush1.bf16.msra.mxu0 %v1539
        %1557 = vmatprep.subr.bf16.mxu0 0
        %1558 = vmatpush2.bf16.msra.mxu0 0
        %1559 = vmatprep.subr.bf16.mxu0 0
        %1560 = vmatpush2.bf16.msra.mxu0 0
        %1561 = vmatprep.subr.bf16.mxu0 0
        %1562 = vmatpush2.bf16.msra.mxu0 0
        %1563 = vmatprep.subr.bf16.mxu0 0
        %1564 = vmatpush2.bf16.msra.mxu0 0
        %1565 = vmatprep.subr.bf16.mxu0 0
        %1566 = vmatpush2.bf16.msra.mxu0 0
        %1567 = vmatprep.subr.bf16.mxu0 0
        %1568 = vmatpush2.bf16.msra.mxu0 0
        %1569 = vmatprep.subr.bf16.mxu0 0
        %1570 = vmatpush2.bf16.msra.mxu0 0
        %1571 = vmatprep.subr.bf16.mxu0 0
        %1572 = vmatpush2.bf16.msra.mxu0 0
        %1573 = vmatprep.mubr.bf16.mxu0 0
        %1574 = vmatmul.mubr.bf16.gmra.mxu0 %v1536
        %v1575 = vpop.f32.mrf.mxu0
        %v1576 = vadd.f32 0.0, %v1575
        %v1577 = vpop.f32.mrf.mxu0
        %v1578 = vpop.f32.mrf.mxu0
        %v1579 = vpop.f32.mrf.mxu0
        %1580 = vdwg.mxu0
        %v1582 = vsel %vm1487, %v1481, 0
        %v1585 = vsel %vm1491, %v1485, 0
        %1587 = vmatprep.subr.bf16.mxu0 0
        %1588 = vmatpush1.bf16.msra.mxu0 0
        %1589 = vmatprep.subr.bf16.mxu0 0
        %1590 = vmatpush1.bf16.msra.mxu0 0
        %1591 = vmatprep.subr.bf16.mxu0 0
        %1592 = vmatpush1.bf16.msra.mxu0 0
        %1593 = vmatprep.subr.bf16.mxu0 0
        %1594 = vmatpush1.bf16.msra.mxu0 0
        %1595 = vmatprep.subr.bf16.mxu0 0
        %1596 = vmatpush1.bf16.msra.mxu0 0
        %1597 = vmatprep.subr.bf16.mxu0 0
        %1598 = vmatpush1.bf16.msra.mxu0 0
        %1599 = vmatprep.subr.bf16.mxu0 0
        %1600 = vmatpush1.bf16.msra.mxu0 0
        %1601 = vmatprep.subr.bf16.mxu0 0
        %1602 = vmatpush1.bf16.msra.mxu0 %v1585
        %1603 = vmatprep.subr.bf16.mxu0 0
        %1604 = vmatpush2.bf16.msra.mxu0 0
        %1605 = vmatprep.subr.bf16.mxu0 0
        %1606 = vmatpush2.bf16.msra.mxu0 0
        %1607 = vmatprep.subr.bf16.mxu0 0
        %1608 = vmatpush2.bf16.msra.mxu0 0
        %1609 = vmatprep.subr.bf16.mxu0 0
        %1610 = vmatpush2.bf16.msra.mxu0 0
        %1611 = vmatprep.subr.bf16.mxu0 0
        %1612 = vmatpush2.bf16.msra.mxu0 0
        %1613 = vmatprep.subr.bf16.mxu0 0
        %1614 = vmatpush2.bf16.msra.mxu0 0
        %1615 = vmatprep.subr.bf16.mxu0 0
        %1616 = vmatpush2.bf16.msra.mxu0 0
        %1617 = vmatprep.subr.bf16.mxu0 0
        %1618 = vmatpush2.bf16.msra.mxu0 0
        %1619 = vmatprep.mubr.bf16.mxu0 0
        %1620 = vmatmul.mubr.bf16.gmra.mxu0 %v1582
        %v1621 = vpop.f32.mrf.mxu0
        %v1622 = vadd.f32 0.0, %v1621
        %v1623 = vpop.f32.mrf.mxu0
        %v1624 = vpop.f32.mrf.mxu0
        %v1625 = vpop.f32.mrf.mxu0
        %1626 = vdwg.mxu0
        %v1628 = vsel %vm1487, %v1482, 0
        %v1631 = vsel %vm1491, %v1486, 0
        %1633 = vmatprep.subr.bf16.mxu0 0
        %1634 = vmatpush1.bf16.msra.mxu0 0
        %1635 = vmatprep.subr.bf16.mxu0 0
        %1636 = vmatpush1.bf16.msra.mxu0 0
        %1637 = vmatprep.subr.bf16.mxu0 0
        %1638 = vmatpush1.bf16.msra.mxu0 0
        %1639 = vmatprep.subr.bf16.mxu0 0
        %1640 = vmatpush1.bf16.msra.mxu0 0
        %1641 = vmatprep.subr.bf16.mxu0 0
        %1642 = vmatpush1.bf16.msra.mxu0 0
        %1643 = vmatprep.subr.bf16.mxu0 0
        %1644 = vmatpush1.bf16.msra.mxu0 0
        %1645 = vmatprep.subr.bf16.mxu0 0
        %1646 = vmatpush1.bf16.msra.mxu0 0
        %1647 = vmatprep.subr.bf16.mxu0 0
        %1648 = vmatpush1.bf16.msra.mxu0 %v1631
        %1649 = vmatprep.subr.bf16.mxu0 0
        %1650 = vmatpush2.bf16.msra.mxu0 0
        %1651 = vmatprep.subr.bf16.mxu0 0
        %1652 = vmatpush2.bf16.msra.mxu0 0
        %1653 = vmatprep.subr.bf16.mxu0 0
        %1654 = vmatpush2.bf16.msra.mxu0 0
        %1655 = vmatprep.subr.bf16.mxu0 0
        %1656 = vmatpush2.bf16.msra.mxu0 0
        %1657 = vmatprep.subr.bf16.mxu0 0
        %1658 = vmatpush2.bf16.msra.mxu0 0
        %1659 = vmatprep.subr.bf16.mxu0 0
        %1660 = vmatpush2.bf16.msra.mxu0 0
        %1661 = vmatprep.subr.bf16.mxu0 0
        %1662 = vmatpush2.bf16.msra.mxu0 0
        %1663 = vmatprep.subr.bf16.mxu0 0
        %1664 = vmatpush2.bf16.msra.mxu0 0
        %1665 = vmatprep.mubr.bf16.mxu0 0
        %1666 = vmatmul.mubr.bf16.gmra.mxu0 %v1628
        %v1667 = vpop.f32.mrf.mxu0
        %v1668 = vadd.f32 0.0, %v1667
        %v1669 = vpop.f32.mrf.mxu0
        %v1670 = vpop.f32.mrf.mxu0
        %v1671 = vpop.f32.mrf.mxu0
        %1672 = vdwg.mxu0
        %v1673 = vcombine.low %v1530, %v1622
        %v1675 = vunpack.c.l.s4 1983009808
        %v1676 = vunpack.c.0.s8 %v1675
        %v1677 = vlaneseq
        %v1678 = vshrl.u32 %v1677, 7
        %v1679 = vsub.s32 %v1676, %v1678
        %v1680 = vrot.slane %v1673, %v1679
        %v1681 = vcombine.low %v1576, %v1668
        %v1683 = vunpack.c.l.s4 1983009808
        %v1684 = vunpack.c.0.s8 %v1683
        %v1685 = vlaneseq
        %v1686 = vshrl.u32 %v1685, 7
        %v1687 = vsub.s32 %v1684, %v1686
        %v1688 = vrot.slane %v1681, %v1687
        %v1689 = vcombine.low %v1680, %v1688
        %v1691 = vunpack.c.l.s4 1934713408
        %v1692 = vunpack.c.0.s8 %v1691
        %v1693 = vlaneseq
        %v1694 = vshrl.u32 %v1693, 7
        %v1695 = vsub.s32 %v1692, %v1694
        %v1696 = vrot.slane %v1689, %v1695
        %v1698 = vunpack.c.l.s4 1983009808
        %v1699 = vunpack.c.0.s8 %v1698
        %v1700 = vlaneseq
        %v1701 = vshrl.u32 %v1700, 7
        %v1702 = vsub.s32 %v1699, %v1701
        %v1703 = vrot.slane %v1696, %v1702
        %v1704 = vcombine.high %v1696, 0.0
        %v1706 = vunpack.c.l.s4 1983009808
        %v1707 = vunpack.c.0.s8 %v1706
        %v1708 = vlaneseq
        %v1709 = vshrl.u32 %v1708, 7
        %v1710 = vsub.s32 %v1707, %v1709
        %v1711 = vrot.slane %v1704, %v1710
        %v1712 = vcombine.low %v1703, %v1711
        %v1713 = vcombine.high %v1703, %v1711
        %v1715 = vunpack.c.l.s4 1934713408
        %v1716 = vunpack.c.0.s8 %v1715
        %v1717 = vlaneseq
        %v1718 = vshrl.u32 %v1717, 7
        %v1719 = vsub.s32 %v1716, %v1718
        %v1720 = vrot.slane %v1712, %v1719
        %v1722 = vunpack.c.l.s4 1934713408
        %v1723 = vunpack.c.0.s8 %v1722
        %v1724 = vlaneseq
        %v1725 = vshrl.u32 %v1724, 7
        %v1726 = vsub.s32 %v1723, %v1725
        %v1727 = vrot.slane %v1713, %v1726
        %v1728 = vcombine.high %v1720, 0.0
        %v1729 = vcombine.high %v1727, 0.0
        %1731 = vrot.lane.b32.xlu0 %v1728, 8
        %v1732 = vpop.permute.xlu0 %1731
        %1735 = vrot.lane.b32.xlu0 %v1727, 16
        %v1736 = vpop.permute.xlu0 %1735
        %1739 = vrot.lane.b32.xlu0 %v1729, 24
        %v1740 = vpop.permute.xlu0 %1739
        %v1742 = vsel %vm1245, %v1720, %v1732
        %vm1743 = vcmask 130048
        %v1744 = vsel %vm1743, %v1742, %v1736
        %vm1745 = vcmask 195584
        %v1746 = vsel %vm1745, %v1744, %v1740
        %v1747 = vpack.c.bf16 %v1746, %v1746
        %v1748 = vld [vmem:[%s741] sm:$0xf]
        %v1749 = vld [vmem:[%s741 + $0x4] sm:$0xf]
        %v1750 = vld [vmem:[%s741 + $0x8] sm:$0xf]
        %v1751 = vld [vmem:[%s741 + $0xc] sm:$0xf]
        %v1752 = vld [vmem:[%s744] sm:$0x1]
        %v1754 = vlaneseq
        %v1755 = vshrl.u32 %v1754, 7
        %v1756 = vsub.s32 0, %v1755
        %v1757 = vrot.slane %v1752, %v1756
        %v1763 = vunpack.c.l.b16 %v1748
        %v1764 = vunpack.c.l.b16 %v1749
        %v1765 = vunpack.c.l.b16 %v1750
        %v1766 = vunpack.c.l.b16 %v1751
        %v1767 = vpack.c.b16 %v1764, %v1763
        %v1768 = vpack.c.b16 %v1766, %v1765
        %v1772 = vsel %vm988, %v1747, 0
        %1774 = vmatprep.subr.bf16.mxu0 0
        %1775 = vmatpush1.bf16.msra.mxu0 0
        %1776 = vmatprep.subr.bf16.mxu0 0
        %1777 = vmatpush1.bf16.msra.mxu0 0
        %1778 = vmatprep.subr.bf16.mxu0 0
        %1779 = vmatpush1.bf16.msra.mxu0 0
        %1780 = vmatprep.subr.bf16.mxu0 0
        %1781 = vmatpush1.bf16.msra.mxu0 0
        %1782 = vmatprep.subr.bf16.mxu0 0
        %1783 = vmatpush1.bf16.msra.mxu0 0
        %1784 = vmatprep.subr.bf16.mxu0 0
        %1785 = vmatpush1.bf16.msra.mxu0 0
        %1786 = vmatprep.subr.bf16.mxu0 0
        %1787 = vmatpush1.bf16.msra.mxu0 %v1768
        %1788 = vmatprep.subr.bf16.mxu0 0
        %1789 = vmatpush1.bf16.msra.mxu0 %v1767
        %1790 = vmatprep.subr.bf16.mxu0 0
        %1791 = vmatpush2.bf16.msra.mxu0 0
        %1792 = vmatprep.subr.bf16.mxu0 0
        %1793 = vmatpush2.bf16.msra.mxu0 0
        %1794 = vmatprep.subr.bf16.mxu0 0
        %1795 = vmatpush2.bf16.msra.mxu0 0
        %1796 = vmatprep.subr.bf16.mxu0 0
        %1797 = vmatpush2.bf16.msra.mxu0 0
        %1798 = vmatprep.subr.bf16.mxu0 0
        %1799 = vmatpush2.bf16.msra.mxu0 0
        %1800 = vmatprep.subr.bf16.mxu0 0
        %1801 = vmatpush2.bf16.msra.mxu0 0
        %1802 = vmatprep.subr.bf16.mxu0 0
        %1803 = vmatpush2.bf16.msra.mxu0 0
        %1804 = vmatprep.subr.bf16.mxu0 0
        %1805 = vmatpush2.bf16.msra.mxu0 0
        %1806 = vmatprep.mubr.bf16.mxu0 0
        %1807 = vmatmul.mubr.bf16.gmra.mxu0 %v1772
        %v1808 = vpop.f32.mrf.mxu0
        %v1809 = vadd.f32 %v1757, %v1808
        %v1810 = vpop.f32.mrf.mxu0
        %v1811 = vpop.f32.mrf.mxu0
        %v1812 = vpop.f32.mrf.mxu0
        %1813 = vdwg.mxu0
        %v1814 = vadd.f32 %v929, %v1809
        %v1815 = vld [vmem:[%s747] sm:$0x1]
        %v1816 = vld [vmem:[%s750] sm:$0x1]
        %v1817 = vsel %vm932, %v1814, 0.0
        %1818 = vadd.xlane.f32.xlu0 %v1817
        %v1819 = vpop.xlane.xlu0 %1818
        %v1820 = vmul.f32 %v1819, %v936
        %v1821 = vmul.f32 %v1814, %v1814
        %v1822 = vsel %vm932, %v1821, 0.0
        %1823 = vadd.xlane.f32.xlu0 %v1822
        %v1824 = vpop.xlane.xlu0 %1823
        %v1825 = vmul.f32 %v1824, %v936
        %v1826 = vmul.f32 %v1820, %v1820
        %v1827 = vsub.f32 %v1825, %v1826
        %v1828 = vmax.f32 %v1827, 0.0
        %v1829 = vsub.f32 %v1814, %v1820
        %v1830 = vadd.f32 %v1828, 1e-12
        %v1831 = vrsqrt.pop %v1830
        %v1832 = vmul.f32 %v1829, %v1831
        %v1834 = vlaneseq
        %v1835 = vshrl.u32 %v1834, 7
        %v1836 = vsub.s32 0, %v1835
        %v1837 = vrot.slane %v1815, %v1836
        %v1839 = vmul.f32 %v1832, %v1837
        %v1841 = vlaneseq
        %v1842 = vshrl.u32 %v1841, 7
        %v1843 = vsub.s32 0, %v1842
        %v1844 = vrot.slane %v1816, %v1843
        %v1846 = vadd.f32 %v1839, %v1844
        %v1847 = vpack.c.bf16 %v1846, %v1846
        %v1848 = vld [vmem:[%s755] sm:$0xf]
        %v1849 = vld [vmem:[%s755 + $0x4] sm:$0xf]
        %v1850 = vld [vmem:[%s755 + $0x8] sm:$0xf]
        %v1851 = vld [vmem:[%s755 + $0xc] sm:$0xf]
        %v1852 = vld [vmem:[%s758] sm:$0x1]
        %v1854 = vlaneseq
        %v1855 = vshrl.u32 %v1854, 7
        %v1856 = vsub.s32 0, %v1855
        %v1857 = vrot.slane %v1852, %v1856
        %v1863 = vunpack.c.l.b16 %v1848
        %v1864 = vunpack.c.l.b16 %v1849
        %v1865 = vunpack.c.l.b16 %v1850
        %v1866 = vunpack.c.l.b16 %v1851
        %v1867 = vpack.c.b16 %v1864, %v1863
        %v1868 = vpack.c.b16 %v1866, %v1865
        %v1872 = vsel %vm988, %v1847, 0
        %1874 = vmatprep.subr.bf16.mxu0 0
        %1875 = vmatpush1.bf16.msra.mxu0 0
        %1876 = vmatprep.subr.bf16.mxu0 0
        %1877 = vmatpush1.bf16.msra.mxu0 0
        %1878 = vmatprep.subr.bf16.mxu0 0
        %1879 = vmatpush1.bf16.msra.mxu0 0
        %1880 = vmatprep.subr.bf16.mxu0 0
        %1881 = vmatpush1.bf16.msra.mxu0 0
        %1882 = vmatprep.subr.bf16.mxu0 0
        %1883 = vmatpush1.bf16.msra.mxu0 0
        %1884 = vmatprep.subr.bf16.mxu0 0
        %1885 = vmatpush1.bf16.msra.mxu0 0
        %1886 = vmatprep.subr.bf16.mxu0 0
        %1887 = vmatpush1.bf16.msra.mxu0 %v1868
        %1888 = vmatprep.subr.bf16.mxu0 0
        %1889 = vmatpush1.bf16.msra.mxu0 %v1867
        %1890 = vmatprep.subr.bf16.mxu0 0
        %1891 = vmatpush2.bf16.msra.mxu0 0
        %1892 = vmatprep.subr.bf16.mxu0 0
        %1893 = vmatpush2.bf16.msra.mxu0 0
        %1894 = vmatprep.subr.bf16.mxu0 0
        %1895 = vmatpush2.bf16.msra.mxu0 0
        %1896 = vmatprep.subr.bf16.mxu0 0
        %1897 = vmatpush2.bf16.msra.mxu0 0
        %1898 = vmatprep.subr.bf16.mxu0 0
        %1899 = vmatpush2.bf16.msra.mxu0 0
        %1900 = vmatprep.subr.bf16.mxu0 0
        %1901 = vmatpush2.bf16.msra.mxu0 0
        %1902 = vmatprep.subr.bf16.mxu0 0
        %1903 = vmatpush2.bf16.msra.mxu0 0
        %1904 = vmatprep.subr.bf16.mxu0 0
        %1905 = vmatpush2.bf16.msra.mxu0 0
        %1906 = vmatprep.mubr.bf16.mxu0 0
        %1907 = vmatmul.mubr.bf16.gmra.mxu0 %v1872
        %v1908 = vpop.f32.mrf.mxu0
        %v1909 = vadd.f32 %v1857, %v1908
        %v1910 = vpop.f32.mrf.mxu0
        %v1911 = vpop.f32.mrf.mxu0
        %v1912 = vpop.f32.mrf.mxu0
        %1913 = vdwg.mxu0
        %v1914 = vmul.f32 %v1909, 0.5
        %v1915 = vmul.f32 %v1909, 0.044715
        %v1916 = vmul.f32 %v1915, %v1909
        %v1917 = vmul.f32 %v1916, %v1909
        %v1918 = vadd.f32 %v1909, %v1917
        %v1919 = vmul.f32 %v1918, 0.7978846
        %v1920 = vtanh.pop %v1919
        %v1921 = vadd.f32 %v1920, 1.0
        %v1922 = vmul.f32 %v1914, %v1921
        %v1923 = vpack.c.bf16 %v1922, %v1922
        %v1924 = vld [vmem:[%s763] sm:$0xf]
        %v1925 = vld [vmem:[%s763 + $0x4] sm:$0xf]
        %v1926 = vld [vmem:[%s763 + $0x8] sm:$0xf]
        %v1927 = vld [vmem:[%s763 + $0xc] sm:$0xf]
        %v1928 = vld [vmem:[%s763 + $0x10] sm:$0xf]
        %v1929 = vld [vmem:[%s763 + $0x14] sm:$0xf]
        %v1930 = vld [vmem:[%s763 + $0x18] sm:$0xf]
        %v1931 = vld [vmem:[%s763 + $0x1c] sm:$0xf]
        %v1932 = vld [vmem:[%s766] sm:$0x1]
        %v1934 = vlaneseq
        %v1935 = vshrl.u32 %v1934, 7
        %v1936 = vsub.s32 0, %v1935
        %v1937 = vrot.slane %v1932, %v1936
        %v1947 = vunpack.c.l.b16 %v1924
        %v1948 = vunpack.c.l.b16 %v1925
        %v1949 = vunpack.c.l.b16 %v1926
        %v1950 = vunpack.c.l.b16 %v1927
        %v1951 = vunpack.c.l.b16 %v1928
        %v1952 = vunpack.c.l.b16 %v1929
        %v1953 = vunpack.c.l.b16 %v1930
        %v1954 = vunpack.c.l.b16 %v1931
        %v1955 = vpack.c.b16 %v1948, %v1947
        %v1956 = vpack.c.b16 %v1950, %v1949
        %v1957 = vpack.c.b16 %v1952, %v1951
        %v1958 = vpack.c.b16 %v1954, %v1953
        %vm1963 = vcmask 523264
        %v1965 = vsel %vm1963, %v1923, 0
        %1967 = vmatprep.subr.bf16.mxu0 0
        %1968 = vmatpush1.bf16.msra.mxu0 0
        %1969 = vmatprep.subr.bf16.mxu0 0
        %1970 = vmatpush1.bf16.msra.mxu0 0
        %1971 = vmatprep.subr.bf16.mxu0 0
        %1972 = vmatpush1.bf16.msra.mxu0 0
        %1973 = vmatprep.subr.bf16.mxu0 0
        %1974 = vmatpush1.bf16.msra.mxu0 0
        %1975 = vmatprep.subr.bf16.mxu0 0
        %1976 = vmatpush1.bf16.msra.mxu0 %v1958
        %1977 = vmatprep.subr.bf16.mxu0 0
        %1978 = vmatpush1.bf16.msra.mxu0 %v1957
        %1979 = vmatprep.subr.bf16.mxu0 0
        %1980 = vmatpush1.bf16.msra.mxu0 %v1956
        %1981 = vmatprep.subr.bf16.mxu0 0
        %1982 = vmatpush1.bf16.msra.mxu0 %v1955
        %1983 = vmatprep.subr.bf16.mxu0 0
        %1984 = vmatpush2.bf16.msra.mxu0 0
        %1985 = vmatprep.subr.bf16.mxu0 0
        %1986 = vmatpush2.bf16.msra.mxu0 0
        %1987 = vmatprep.subr.bf16.mxu0 0
        %1988 = vmatpush2.bf16.msra.mxu0 0
        %1989 = vmatprep.subr.bf16.mxu0 0
        %1990 = vmatpush2.bf16.msra.mxu0 0
        %1991 = vmatprep.subr.bf16.mxu0 0
        %1992 = vmatpush2.bf16.msra.mxu0 0
        %1993 = vmatprep.subr.bf16.mxu0 0
        %1994 = vmatpush2.bf16.msra.mxu0 0
        %1995 = vmatprep.subr.bf16.mxu0 0
        %1996 = vmatpush2.bf16.msra.mxu0 0
        %1997 = vmatprep.subr.bf16.mxu0 0
        %1998 = vmatpush2.bf16.msra.mxu0 0
        %1999 = vmatprep.mubr.bf16.mxu0 0
        %2000 = vmatmul.mubr.bf16.gmra.mxu0 %v1965
        %v2001 = vpop.f32.mrf.mxu0
        %v2002 = vadd.f32 %v1937, %v2001
        %v2003 = vpop.f32.mrf.mxu0
        %v2004 = vpop.f32.mrf.mxu0
        %v2005 = vpop.f32.mrf.mxu0
        %2006 = vdwg.mxu0
        %v2007 = vadd.f32 %v1814, %v2002
        %2008 = vst.msk [vmem:[#allocation2] sm:$0x3] %vm932, %v2007
        %p2009 = scmp.eq.s32.totalorder %s36, 1
        // Predicated region
        $region93: #{vitmae_core_forward.1} parent=87 // pred_check
          %p2010 = pneg %p2009
        $region94: #{vitmae_core_forward.1} parent=87 // pred_check_branch
          %2012 = sbr.rel (%p2010) target = $region96
        $region95: #{vitmae_core_forward.1} parent=87 // pred_region
          %v2013 = vld [vmem:[%s15] sm:$0x1]
          %v2014 = vld [vmem:[%s16] sm:$0x1]
          %vm2015 = vcmask 253952
          %v2016 = vsel %vm2015, %v2007, 0.0
          %2017 = vadd.xlane.f32.xlu0 %v2016
          %v2018 = vpop.xlane.xlu0 %2017
          %v2019 = vmul.f32 %v2018, %v936
          %v2020 = vmul.f32 %v2007, %v2007
          %v2021 = vsel %vm2015, %v2020, 0.0
          %2022 = vadd.xlane.f32.xlu0 %v2021
          %v2023 = vpop.xlane.xlu0 %2022
          %v2024 = vmul.f32 %v2023, %v936
          %v2025 = vmul.f32 %v2019, %v2019
          %v2026 = vsub.f32 %v2024, %v2025
          %v2027 = vmax.f32 %v2026, 0.0
          %v2028 = vsub.f32 %v2007, %v2019
          %v2029 = vadd.f32 %v2027, 1e-12
          %v2030 = vrsqrt.pop %v2029
          %v2031 = vmul.f32 %v2028, %v2030
          %v2032 = vmul.f32 %v2031, %v2013
          %v2033 = vadd.f32 %v2032, %v2014
          %2034 = vst.msk [vmem:[%s713] sm:$0x1] %vm2015, %v2033
        $region96: #{vitmae_core_forward.1} parent=87 // pred_fallthru
          _
        %s2035 = sand.u32 %s478, 1
        %s2036 = scalar_lea.sflag [#allocation4], %s2035
        %s2037 = sand.u32 %s478, 1
        %s2038 = scalar_lea.vmem [#allocation3], %s2037
        // Predicated region
        $region97: #{vitmae_core_forward.1} parent=87 // pred_check
          %p2039 = pneg %p488
        $region98: #{vitmae_core_forward.1} parent=87 // pred_check_branch
          %2041 = sbr.rel (%p2039) target = $region100
        $region99: #{vitmae_core_forward.1} parent=87 // pred_region
          %s2043 = ssub.s32 16, 16
          %2044 = vsyncadd %s2036, %s2043
          %s2045 = smul.addr %s35, 16
          %s2046 = scalar_lea.hbm %s17, %s2045
          %s2048 = sshll.u32 %s2038, 4
          %s2049 = int_to_ptr.vmem [resolvable:$true] %s2048
          %2051 = dma.vmem_to_hbm [thread:$0]  %s2049, 16, %s2046, %s2036
        $region100: #{vitmae_core_forward.1} parent=87 // pred_fallthru
          _
      $region88: #{vitmae_core_forward.1} parent=5 // pred_fallthru
        _
      %p2052 = scmp.le.s32.totalorder 2, %s26
      // Predicated region
      $region101: #{vitmae_core_forward.1} parent=5 // pred_check
        %p2053 = pneg %p2052
      $region102: #{vitmae_core_forward.1} parent=5 // pred_check_branch
        %2055 = sbr.rel (%p2053) target = $region104
      $region103: #{vitmae_core_forward.1} parent=5 // pred_region
        %s2056 = ssub.s32 %s26, 2
        // Predicated region
        $region105: #{vitmae_core_forward.1} parent=103 // pred_check
          %p2057 = pneg %p494
        $region106: #{vitmae_core_forward.1} parent=103 // pred_check_branch
          %2059 = sbr.rel (%p2057) target = $region108
        $region107: #{vitmae_core_forward.1} parent=103 // pred_region
          %s2060 = sand.u32 %s479, 1
          %s2061 = scalar_lea.sflag [#allocation4], %s2060
          %s2062 = sand.u32 %s479, 1
          %s2063 = scalar_lea.vmem [#allocation3], %s2062
          %2064 = dma.done %s2061, 16
        $region108: #{vitmae_core_forward.1} parent=103 // pred_fallthru
          _
      $region104: #{vitmae_core_forward.1} parent=5 // pred_fallthru
        _
    $region6: #{vitmae_core_forward.1} parent=1 // loop_footer
      %s30 = sadd.s32 1, %s26
    $region7: #{vitmae_core_forward.1} parent=1 // loop_footer_branch
      %25 = sbr.rel target = $region3
    $region8: #{vitmae_core_forward.1} parent=1 // loop_exit
      _
    %2065 = vsyncpa [#allocation4], 1
    %s2066 = scalar_lea.sflag [#allocation4], 1
    %2067 = vsyncpa %s2066, 1

</llo_original>
